<compile_context>
chip_gen: v6e
topology: v6e:2x2x1
jax: 0.10.0
libtpu: 0.0.40
codegen_flags: <defaults>
</compile_context>

<pallas_src>
import functools

import jax
import jax.numpy as jnp
import numpy as np
from jax.experimental import pallas as pl
from jax.experimental.pallas import tpu as pltpu


# ----------------------- shared GroupNorm + ReLU epilogue -------------------- #
def _groupnorm_relu_store(conv, aux_ref, mmat_ref, o_ref, eps):
    """conv: (C_out, HW) f32, bias already added.  Writes o_ref[0]."""
    mmat = mmat_ref[...]                                          # (C_out, C_out)
    # two-pass centered variance, all f32; 1/(HW*cpg) is folded into mmat
    s1 = jnp.sum(conv, axis=1, keepdims=True)                     # (C_out, 1)
    mean_c = jnp.dot(mmat, s1, preferred_element_type=jnp.float32)
    centered = conv - mean_c                                      # (C_out, HW)
    s2 = jnp.sum(centered * centered, axis=1, keepdims=True)      # (C_out, 1)
    var_c = jnp.dot(mmat, s2, preferred_element_type=jnp.float32)
    inv_c = jax.lax.rsqrt(var_c + eps)                            # (C_out, 1)
    # folded affine + ReLU (aux cols: 0=bias, 1=gamma, 2=beta)
    scale_c = inv_c * aux_ref[:, 1:2]
    y = centered * scale_c + aux_ref[:, 2:3]
    o_ref[0] = jnp.maximum(y, 0.0).astype(o_ref.dtype)


# --------------------- fused (in-kernel im2col) conv kernel ------------------ #
def _cgr_fused_kernel(x_ref, w_ref, mask_ref, aux_ref, mmat_ref, o_ref, *,
                      eps, offsets, pad_lo):
    # x_ref    : (1, C_in, HWP) f32    flat spatial, halo-padded by pad_lo/pad_hi
    # w_ref    : (KK, C_out, C_in) bf16  per-tap conv weights
    # mask_ref : (KK, 1, HW) bf16        border validity masks per tap
    # aux_ref  : (C_out, 128) f32        col0=bias col1=gamma col2=beta
    # mmat_ref : (C_out, C_out) f32      group-average matrix (1/count folded)
    # o_ref    : (1, C_out, HW) f32
    c_out, hw = o_ref.shape[1], o_ref.shape[2]
    conv = jnp.zeros((c_out, hw), jnp.float32)
    for t, off in enumerate(offsets):                       # KK taps, unrolled
        xs = x_ref[0, :, pl.ds(pad_lo + off, hw)]           # (C_in, HW) f32
        xs = xs.astype(jnp.bfloat16) * mask_ref[t]          # zero out-of-bounds
        conv = conv + jnp.dot(w_ref[t], xs,
                              preferred_element_type=jnp.float32)
    conv = conv + aux_ref[:, 0:1]                            # conv bias
    _groupnorm_relu_store(conv, aux_ref, mmat_ref, o_ref, eps)


# ------------------ fallback (host im2col) conv kernel ----------------------- #
def _cgr_im2col_kernel(patch_ref, w_ref, aux_ref, mmat_ref, o_ref, *, eps):
    # patch_ref: (1, CKK_PAD, HW) bf16   channel-major im2col patches
    # w_ref    : (C_out, CKK_PAD) bf16
    x = patch_ref[0]
    conv = jnp.dot(w_ref[...], x,
                   preferred_element_type=jnp.float32) + aux_ref[:, 0:1]
    _groupnorm_relu_store(conv, aux_ref, mmat_ref, o_ref, eps)


# ------------------------------ host-side glue ------------------------------- #
def _run_fused(x, weight, aux, mmat, *, padding, dilation, eps):
    """stride==1 'same' conv path: no materialized patches."""
    n, c_in, h, w_sp = x.shape
    c_out, _, k, _ = weight.shape
    hw = h * w_sp
    kk = k * k

    offsets, mask_rows = [], []
    ys, xs = np.arange(h), np.arange(w_sp)
    for kh in range(k):
        for kw in range(k):
            dy = kh * dilation - padding
            dx = kw * dilation - padding
            offsets.append(dy * w_sp + dx)
            vy = (ys + dy >= 0) & (ys + dy < h)
            vx = (xs + dx >= 0) & (xs + dx < w_sp)
            mask_rows.append((vy[:, None] & vx[None, :]).reshape(-1))
    offsets = tuple(offsets)
    masks = jnp.asarray(np.stack(mask_rows).astype(np.float32)
                        ).reshape(kk, 1, hw).astype(jnp.bfloat16)

    pad_lo = max(0, -min(offsets))
    pad_hi = max(0, max(offsets))
    hwp = hw + pad_lo + pad_hi
    x_flat = jnp.pad(x.reshape(n, c_in, hw),
                     ((0, 0), (0, 0), (pad_lo, pad_hi)))          # (N,C_in,HWP) f32
    w_taps = jnp.transpose(weight, (2, 3, 0, 1)).reshape(
        kk, c_out, c_in).astype(jnp.bfloat16)                     # (KK,C_out,C_in)

    kernel = functools.partial(_cgr_fused_kernel, eps=eps,
                               offsets=offsets, pad_lo=pad_lo)
    out = pl.pallas_call(
        kernel,
        out_shape=jax.ShapeDtypeStruct((n, c_out, hw), jnp.float32),
        grid_spec=pltpu.PrefetchScalarGridSpec(
            num_scalar_prefetch=0,
            grid=(n,),
            in_specs=[
                pl.BlockSpec((1, c_in, hwp), lambda i: (i, 0, 0)),
                pl.BlockSpec((kk, c_out, c_in), lambda i: (0, 0, 0)),
                pl.BlockSpec((kk, 1, hw), lambda i: (0, 0, 0)),
                pl.BlockSpec((c_out, 128), lambda i: (0, 0)),
                pl.BlockSpec((c_out, c_out), lambda i: (0, 0)),
            ],
            out_specs=pl.BlockSpec((1, c_out, hw), lambda i: (i, 0, 0)),
        ),
        compiler_params=pltpu.CompilerParams(
            dimension_semantics=("parallel",)),
    )(x_flat, w_taps, masks, aux, mmat)
    return out.reshape(n, c_out, h, w_sp)


def _extract_patches_cm(x, k, stride, padding, dilation):
    """im2col: NCHW -> (N, C*k*k, H_out*W_out), channel-major patch order."""
    n, c, h, w = x.shape
    h_out = (h + 2 * padding - dilation * (k - 1) - 1) // stride + 1
    w_out = (w + 2 * padding - dilation * (k - 1) - 1) // stride + 1
    xp = jnp.pad(x, ((0, 0), (0, 0), (padding, padding), (padding, padding)))
    slabs = []
    for kh in range(k):
        for kw in range(k):
            h0 = kh * dilation
            w0 = kw * dilation
            sl = xp[:, :,
                    h0:h0 + stride * (h_out - 1) + 1:stride,
                    w0:w0 + stride * (w_out - 1) + 1:stride]      # (N,C,Ho,Wo)
            slabs.append(sl)
    p = jnp.stack(slabs, axis=2)                                  # (N,C,KK,Ho,Wo)
    p = p.reshape(n, c * k * k, h_out * w_out)                    # (N,CKK,HW)
    return p, h_out, w_out


def _run_im2col(x, weight, aux, mmat, *, stride, padding, dilation, eps):
    """general stride path: host-side im2col, CKK padded to bf16 sublane (16)."""
    n, c_in, _, _ = x.shape
    c_out, _, k, _ = weight.shape
    patches, h_out, w_out = _extract_patches_cm(x, k, stride, padding, dilation)
    hw = h_out * w_out
    ckk = c_in * k * k
    ckk_pad = ((ckk + 15) // 16) * 16       # bf16 sublane multiple (was 128)

    patches_p = jnp.pad(
        patches, ((0, 0), (0, ckk_pad - ckk), (0, 0))).astype(jnp.bfloat16)
    w_flat = jnp.pad(
        weight.reshape(c_out, ckk).astype(jnp.float32),
        ((0, 0), (0, ckk_pad - ckk))).astype(jnp.bfloat16)        # (C_out,CKK_PAD)

    kernel = functools.partial(_cgr_im2col_kernel, eps=eps)
    out = pl.pallas_call(
        kernel,
        out_shape=jax.ShapeDtypeStruct((n, c_out, hw), jnp.float32),
        grid_spec=pltpu.PrefetchScalarGridSpec(
            num_scalar_prefetch=0,
            grid=(n,),
            in_specs=[
                pl.BlockSpec((1, ckk_pad, hw), lambda i: (i, 0, 0)),
                pl.BlockSpec((c_out, ckk_pad), lambda i: (0, 0)),
                pl.BlockSpec((c_out, 128), lambda i: (0, 0)),
                pl.BlockSpec((c_out, c_out), lambda i: (0, 0)),
            ],
            out_specs=pl.BlockSpec((1, c_out, hw), lambda i: (i, 0, 0)),
        ),
        compiler_params=pltpu.CompilerParams(
            dimension_semantics=("parallel",)),
    )(patches_p, w_flat, aux, mmat)
    return out.reshape(n, c_out, h_out, w_out)


def conv2d_groupnorm_relu(x, weight, bias, gamma, beta, *, stride, padding,
                          dilation, n_groups, eps=1e-5):
    """x: (N, C_in, H, W) f32; weight: (C_out, C_in, KH, KW). Returns NCHW f32."""
    n, c_in, h, w_sp = x.shape
    c_out, c_in_w, kh_, kw_ = weight.shape
    assert kh_ == kw_ and c_in_w == c_in
    assert c_out % n_groups == 0, "n_filters must be divisible by n_groups"
    k = kh_
    h_out = (h + 2 * padding - dilation * (k - 1) - 1) // stride + 1
    w_out = (w_sp + 2 * padding - dilation * (k - 1) - 1) // stride + 1
    cpg = c_out // n_groups

    # packed per-channel scalars: one lane-dense block (col0=bias,1=gamma,2=beta)
    aux = jnp.pad(jnp.stack([bias, gamma, beta], axis=1).astype(jnp.float32),
                  ((0, 0), (0, 128 - 3)))                         # (C_out, 128)
    # block-diagonal group-average matrix with 1/(HW_out*cpg) folded in
    grp = np.arange(c_out) // cpg
    mmat = jnp.asarray((grp[:, None] == grp[None, :]).astype(np.float32)
                       / float(h_out * w_out * cpg))              # (C_out, C_out)

    if stride == 1 and h_out == h and w_out == w_sp:
        return _run_fused(x, weight, aux, mmat,
                          padding=padding, dilation=dilation, eps=eps)
    return _run_im2col(x, weight, aux, mmat, stride=stride, padding=padding,
                       dilation=dilation, eps=eps)


# ------------------------- pure-JAX reference -------------------------------- #
def _reference(x, weight, bias, gamma, beta, *, stride, padding, dilation,
               n_groups, eps=1e-5):
    conv = jax.lax.conv_general_dilated(
        x, weight, window_strides=(stride, stride),
        padding=[(padding, padding), (padding, padding)],
        rhs_dilation=(dilation, dilation),
        dimension_numbers=("NCHW", "OIHW", "NCHW"),
        precision=jax.lax.Precision.HIGHEST)
    conv = conv + bias.reshape(1, -1, 1, 1)
    n, c, h, w = conv.shape
    g = conv.reshape(n, n_groups, c // n_groups, h, w)
    mean = g.mean(axis=(2, 3, 4), keepdims=True)
    var = g.var(axis=(2, 3, 4), keepdims=True)
    gn = ((g - mean) * jax.lax.rsqrt(var + eps)).reshape(n, c, h, w)
    gn = gn * gamma.reshape(1, -1, 1, 1) + beta.reshape(1, -1, 1, 1)
    return jnp.maximum(gn, 0.0)


# --------------------------------- main -------------------------------------- #
if __name__ == "__main__":
    # module config: conv2DGroupNormRelu(in_channels=8, n_filters=32, k_size=3,
    #                stride=1, padding=1, bias=True, dilation=1, n_groups=16)
    N, C_IN, H, W = 2, 8, 16, 16
    C_OUT, K, STRIDE, PAD, DIL, GROUPS = 32, 3, 1, 1, 1, 16

    key = jax.random.PRNGKey(0)
    kx, kwt, kb = jax.random.split(key, 3)
    x = jax.random.normal(kx, (N, C_IN, H, W), dtype=jnp.float32)
    fan_in = C_IN * K * K
    bound = 1.0 / (fan_in ** 0.5)
    weight = jax.random.uniform(kwt, (C_OUT, C_IN, K, K), jnp.float32,
                                minval=-bound, maxval=bound)
    bias = jax.random.uniform(kb, (C_OUT,), jnp.float32,
                              minval=-bound, maxval=bound)
    gamma = jnp.ones((C_OUT,), jnp.float32)   # GroupNorm default affine init
    beta = jnp.zeros((C_OUT,), jnp.float32)

    # ---- primary config: fused in-kernel im2col path ----
    out = conv2d_groupnorm_relu(x, weight, bias, gamma, beta,
                                stride=STRIDE, padding=PAD, dilation=DIL,
                                n_groups=GROUPS)
    jax.block_until_ready(out)
    assert out.shape == (N, C_OUT, H, W)

    # Tight check vs a reference using the same bf16-rounded matmul operands
    # (kernel accumulates in f32, GroupNorm math f32 in both).
    x_bf = x.astype(jnp.bfloat16).astype(jnp.float32)
    w_bf = weight.astype(jnp.bfloat16).astype(jnp.float32)
    ref_bf = _reference(x_bf, w_bf, bias, gamma, beta,
                        stride=STRIDE, padding=PAD, dilation=DIL,
                        n_groups=GROUPS)
    assert jnp.max(jnp.abs(out - ref_bf)) < 1e-2, "mismatch vs bf16-operand ref"

    # Coarse sanity check vs the full-f32 reference (bf16 rounding allowed).
    ref_f32 = _reference(x, weight, bias, gamma, beta,
                         stride=STRIDE, padding=PAD, dilation=DIL,
                         n_groups=GROUPS)
    assert jnp.max(jnp.abs(out - ref_f32)) < 1e-1, "gross mismatch vs f32 ref"

    # ---- strided config exercises the general im2col fallback kernel ----
    out_s2 = conv2d_groupnorm_relu(x, weight, bias, gamma, beta,
                                   stride=2, padding=PAD, dilation=DIL,
                                   n_groups=GROUPS)
    jax.block_until_ready(out_s2)
    assert out_s2.shape == (N, C_OUT, 8, 8)
    ref_s2 = _reference(x_bf, w_bf, bias, gamma, beta,
                        stride=2, padding=PAD, dilation=DIL, n_groups=GROUPS)
    assert jnp.max(jnp.abs(out_s2 - ref_s2)) < 1e-2, "fallback path mismatch"

    print("KERNEL_OK")
</pallas_src>

<mosaic_0001>
module attributes {stable_mosaic.version = 11 : i64} {
  func.func @_cgr_fused_kernel(%arg0: i32, %arg1: memref<1x8x290xf32, #tpu.memory_space<vmem>>, %arg2: memref<9x32x8xbf16, #tpu.memory_space<vmem>>, %arg3: memref<9x1x256xbf16, #tpu.memory_space<vmem>>, %arg4: memref<32x128xf32, #tpu.memory_space<vmem>>, %arg5: memref<32x32xf32, #tpu.memory_space<vmem>>, %arg6: memref<1x32x256xf32, #tpu.memory_space<vmem>>) attributes {dimension_semantics = [#tpu.dimension_semantics<parallel>], iteration_bounds = array<i64: 2>, scalar_prefetch = 0 : i64, scratch_operands = 0 : i64, tpu.core_type = #tpu.core_type<tc>, window_params = [{transform_indices = @transform_0, window_bounds = array<i64: 1, 8, 290>}, {pipeline_mode = #tpu.pipeline_mode<synchronous>, transform_indices = @transform_1, window_bounds = array<i64: 9, 32, 8>}, {pipeline_mode = #tpu.pipeline_mode<synchronous>, transform_indices = @transform_2, window_bounds = array<i64: 9, 1, 256>}, {pipeline_mode = #tpu.pipeline_mode<synchronous>, transform_indices = @transform_3, window_bounds = array<i64: 32, 128>}, {pipeline_mode = #tpu.pipeline_mode<synchronous>, transform_indices = @transform_4, window_bounds = array<i64: 32, 32>}, {transform_indices = @transform_5, window_bounds = array<i64: 1, 32, 256>}]} {
    %cst = arith.constant 0.000000e+00 : f32
    %0 = vector.broadcast %cst : f32 to vector<32x256xf32>
    %c0 = arith.constant 0 : index
    %c0_0 = arith.constant 0 : index
    %c0_1 = arith.constant 0 : index
    %1 = vector.load %arg1[%c0, %c0_0, %c0_1] : memref<1x8x290xf32, #tpu.memory_space<vmem>>, vector<1x8x256xf32>
    %2 = vector.shape_cast %1 : vector<1x8x256xf32> to vector<8x256xf32>
    %3 = arith.truncf %2 : vector<8x256xf32> to vector<8x256xbf16>
    %c0_2 = arith.constant 0 : index
    %c0_3 = arith.constant 0 : index
    %c0_4 = arith.constant 0 : index
    %4 = vector.load %arg3[%c0_2, %c0_3, %c0_4] : memref<9x1x256xbf16, #tpu.memory_space<vmem>>, vector<1x1x256xbf16>
    %5 = vector.shape_cast %4 : vector<1x1x256xbf16> to vector<1x256xbf16>
    %6 = vector.broadcast %5 : vector<1x256xbf16> to vector<8x256xbf16>
    %7 = arith.mulf %3, %6 : vector<8x256xbf16>
    %c0_5 = arith.constant 0 : index
    %c0_6 = arith.constant 0 : index
    %c0_7 = arith.constant 0 : index
    %8 = vector.load %arg2[%c0_5, %c0_6, %c0_7] : memref<9x32x8xbf16, #tpu.memory_space<vmem>>, vector<1x32x8xbf16>
    %9 = vector.shape_cast %8 : vector<1x32x8xbf16> to vector<32x8xbf16>
    %cst_8 = arith.constant dense<0.000000e+00> : vector<32x256xf32>
    %10 = tpu.matmul %9, %7, %cst_8 {dimension_numbers = #tpu.dot_dimension_numbers<[1], [0], [0], [1], [0, 0, 1, 1], [], []>} : vector<32x8xbf16>, vector<8x256xbf16>, vector<32x256xf32> -> vector<32x256xf32>
    %11 = arith.addf %0, %10 : vector<32x256xf32>
    %c0_9 = arith.constant 0 : index
    %c0_10 = arith.constant 0 : index
    %c1 = arith.constant 1 : index
    %12 = vector.load %arg1[%c0_9, %c0_10, %c1] : memref<1x8x290xf32, #tpu.memory_space<vmem>>, vector<1x8x256xf32>
    %13 = vector.shape_cast %12 : vector<1x8x256xf32> to vector<8x256xf32>
    %14 = arith.truncf %13 : vector<8x256xf32> to vector<8x256xbf16>
    %c1_11 = arith.constant 1 : index
    %c0_12 = arith.constant 0 : index
    %c0_13 = arith.constant 0 : index
    %15 = vector.load %arg3[%c1_11, %c0_12, %c0_13] : memref<9x1x256xbf16, #tpu.memory_space<vmem>>, vector<1x1x256xbf16>
    %16 = vector.shape_cast %15 : vector<1x1x256xbf16> to vector<1x256xbf16>
    %17 = vector.broadcast %16 : vector<1x256xbf16> to vector<8x256xbf16>
    %18 = arith.mulf %14, %17 : vector<8x256xbf16>
    %c1_14 = arith.constant 1 : index
    %c0_15 = arith.constant 0 : index
    %c0_16 = arith.constant 0 : index
    %19 = vector.load %arg2[%c1_14, %c0_15, %c0_16] : memref<9x32x8xbf16, #tpu.memory_space<vmem>>, vector<1x32x8xbf16>
    %20 = vector.shape_cast %19 : vector<1x32x8xbf16> to vector<32x8xbf16>
    %cst_17 = arith.constant dense<0.000000e+00> : vector<32x256xf32>
    %21 = tpu.matmul %20, %18, %cst_17 {dimension_numbers = #tpu.dot_dimension_numbers<[1], [0], [0], [1], [0, 0, 1, 1], [], []>} : vector<32x8xbf16>, vector<8x256xbf16>, vector<32x256xf32> -> vector<32x256xf32>
    %22 = arith.addf %11, %21 : vector<32x256xf32>
    %c0_18 = arith.constant 0 : index
    %c0_19 = arith.constant 0 : index
    %c2 = arith.constant 2 : index
    %23 = vector.load %arg1[%c0_18, %c0_19, %c2] : memref<1x8x290xf32, #tpu.memory_space<vmem>>, vector<1x8x256xf32>
    %24 = vector.shape_cast %23 : vector<1x8x256xf32> to vector<8x256xf32>
    %25 = arith.truncf %24 : vector<8x256xf32> to vector<8x256xbf16>
    %c2_20 = arith.constant 2 : index
    %c0_21 = arith.constant 0 : index
    %c0_22 = arith.constant 0 : index
    %26 = vector.load %arg3[%c2_20, %c0_21, %c0_22] : memref<9x1x256xbf16, #tpu.memory_space<vmem>>, vector<1x1x256xbf16>
    %27 = vector.shape_cast %26 : vector<1x1x256xbf16> to vector<1x256xbf16>
    %28 = vector.broadcast %27 : vector<1x256xbf16> to vector<8x256xbf16>
    %29 = arith.mulf %25, %28 : vector<8x256xbf16>
    %c2_23 = arith.constant 2 : index
    %c0_24 = arith.constant 0 : index
    %c0_25 = arith.constant 0 : index
    %30 = vector.load %arg2[%c2_23, %c0_24, %c0_25] : memref<9x32x8xbf16, #tpu.memory_space<vmem>>, vector<1x32x8xbf16>
    %31 = vector.shape_cast %30 : vector<1x32x8xbf16> to vector<32x8xbf16>
    %cst_26 = arith.constant dense<0.000000e+00> : vector<32x256xf32>
    %32 = tpu.matmul %31, %29, %cst_26 {dimension_numbers = #tpu.dot_dimension_numbers<[1], [0], [0], [1], [0, 0, 1, 1], [], []>} : vector<32x8xbf16>, vector<8x256xbf16>, vector<32x256xf32> -> vector<32x256xf32>
    %33 = arith.addf %22, %32 : vector<32x256xf32>
    %c0_27 = arith.constant 0 : index
    %c0_28 = arith.constant 0 : index
    %c16 = arith.constant 16 : index
    %34 = vector.load %arg1[%c0_27, %c0_28, %c16] : memref<1x8x290xf32, #tpu.memory_space<vmem>>, vector<1x8x256xf32>
    %35 = vector.shape_cast %34 : vector<1x8x256xf32> to vector<8x256xf32>
    %36 = arith.truncf %35 : vector<8x256xf32> to vector<8x256xbf16>
    %c3 = arith.constant 3 : index
    %c0_29 = arith.constant 0 : index
    %c0_30 = arith.constant 0 : index
    %37 = vector.load %arg3[%c3, %c0_29, %c0_30] : memref<9x1x256xbf16, #tpu.memory_space<vmem>>, vector<1x1x256xbf16>
    %38 = vector.shape_cast %37 : vector<1x1x256xbf16> to vector<1x256xbf16>
    %39 = vector.broadcast %38 : vector<1x256xbf16> to vector<8x256xbf16>
    %40 = arith.mulf %36, %39 : vector<8x256xbf16>
    %c3_31 = arith.constant 3 : index
    %c0_32 = arith.constant 0 : index
    %c0_33 = arith.constant 0 : index
    %41 = vector.load %arg2[%c3_31, %c0_32, %c0_33] : memref<9x32x8xbf16, #tpu.memory_space<vmem>>, vector<1x32x8xbf16>
    %42 = vector.shape_cast %41 : vector<1x32x8xbf16> to vector<32x8xbf16>
    %cst_34 = arith.constant dense<0.000000e+00> : vector<32x256xf32>
    %43 = tpu.matmul %42, %40, %cst_34 {dimension_numbers = #tpu.dot_dimension_numbers<[1], [0], [0], [1], [0, 0, 1, 1], [], []>} : vector<32x8xbf16>, vector<8x256xbf16>, vector<32x256xf32> -> vector<32x256xf32>
    %44 = arith.addf %33, %43 : vector<32x256xf32>
    %c0_35 = arith.constant 0 : index
    %c0_36 = arith.constant 0 : index
    %c17 = arith.constant 17 : index
    %45 = vector.load %arg1[%c0_35, %c0_36, %c17] : memref<1x8x290xf32, #tpu.memory_space<vmem>>, vector<1x8x256xf32>
    %46 = vector.shape_cast %45 : vector<1x8x256xf32> to vector<8x256xf32>
    %47 = arith.truncf %46 : vector<8x256xf32> to vector<8x256xbf16>
    %c4 = arith.constant 4 : index
    %c0_37 = arith.constant 0 : index
    %c0_38 = arith.constant 0 : index
    %48 = vector.load %arg3[%c4, %c0_37, %c0_38] : memref<9x1x256xbf16, #tpu.memory_space<vmem>>, vector<1x1x256xbf16>
    %49 = vector.shape_cast %48 : vector<1x1x256xbf16> to vector<1x256xbf16>
    %50 = vector.broadcast %49 : vector<1x256xbf16> to vector<8x256xbf16>
    %51 = arith.mulf %47, %50 : vector<8x256xbf16>
    %c4_39 = arith.constant 4 : index
    %c0_40 = arith.constant 0 : index
    %c0_41 = arith.constant 0 : index
    %52 = vector.load %arg2[%c4_39, %c0_40, %c0_41] : memref<9x32x8xbf16, #tpu.memory_space<vmem>>, vector<1x32x8xbf16>
    %53 = vector.shape_cast %52 : vector<1x32x8xbf16> to vector<32x8xbf16>
    %cst_42 = arith.constant dense<0.000000e+00> : vector<32x256xf32>
    %54 = tpu.matmul %53, %51, %cst_42 {dimension_numbers = #tpu.dot_dimension_numbers<[1], [0], [0], [1], [0, 0, 1, 1], [], []>} : vector<32x8xbf16>, vector<8x256xbf16>, vector<32x256xf32> -> vector<32x256xf32>
    %55 = arith.addf %44, %54 : vector<32x256xf32>
    %c0_43 = arith.constant 0 : index
    %c0_44 = arith.constant 0 : index
    %c18 = arith.constant 18 : index
    %56 = vector.load %arg1[%c0_43, %c0_44, %c18] : memref<1x8x290xf32, #tpu.memory_space<vmem>>, vector<1x8x256xf32>
    %57 = vector.shape_cast %56 : vector<1x8x256xf32> to vector<8x256xf32>
    %58 = arith.truncf %57 : vector<8x256xf32> to vector<8x256xbf16>
    %c5 = arith.constant 5 : index
    %c0_45 = arith.constant 0 : index
    %c0_46 = arith.constant 0 : index
    %59 = vector.load %arg3[%c5, %c0_45, %c0_46] : memref<9x1x256xbf16, #tpu.memory_space<vmem>>, vector<1x1x256xbf16>
    %60 = vector.shape_cast %59 : vector<1x1x256xbf16> to vector<1x256xbf16>
    %61 = vector.broadcast %60 : vector<1x256xbf16> to vector<8x256xbf16>
    %62 = arith.mulf %58, %61 : vector<8x256xbf16>
    %c5_47 = arith.constant 5 : index
    %c0_48 = arith.constant 0 : index
    %c0_49 = arith.constant 0 : index
    %63 = vector.load %arg2[%c5_47, %c0_48, %c0_49] : memref<9x32x8xbf16, #tpu.memory_space<vmem>>, vector<1x32x8xbf16>
    %64 = vector.shape_cast %63 : vector<1x32x8xbf16> to vector<32x8xbf16>
    %cst_50 = arith.constant dense<0.000000e+00> : vector<32x256xf32>
    %65 = tpu.matmul %64, %62, %cst_50 {dimension_numbers = #tpu.dot_dimension_numbers<[1], [0], [0], [1], [0, 0, 1, 1], [], []>} : vector<32x8xbf16>, vector<8x256xbf16>, vector<32x256xf32> -> vector<32x256xf32>
    %66 = arith.addf %55, %65 : vector<32x256xf32>
    %c0_51 = arith.constant 0 : index
    %c0_52 = arith.constant 0 : index
    %c32 = arith.constant 32 : index
    %67 = vector.load %arg1[%c0_51, %c0_52, %c32] : memref<1x8x290xf32, #tpu.memory_space<vmem>>, vector<1x8x256xf32>
    %68 = vector.shape_cast %67 : vector<1x8x256xf32> to vector<8x256xf32>
    %69 = arith.truncf %68 : vector<8x256xf32> to vector<8x256xbf16>
    %c6 = arith.constant 6 : index
    %c0_53 = arith.constant 0 : index
    %c0_54 = arith.constant 0 : index
    %70 = vector.load %arg3[%c6, %c0_53, %c0_54] : memref<9x1x256xbf16, #tpu.memory_space<vmem>>, vector<1x1x256xbf16>
    %71 = vector.shape_cast %70 : vector<1x1x256xbf16> to vector<1x256xbf16>
    %72 = vector.broadcast %71 : vector<1x256xbf16> to vector<8x256xbf16>
    %73 = arith.mulf %69, %72 : vector<8x256xbf16>
    %c6_55 = arith.constant 6 : index
    %c0_56 = arith.constant 0 : index
    %c0_57 = arith.constant 0 : index
    %74 = vector.load %arg2[%c6_55, %c0_56, %c0_57] : memref<9x32x8xbf16, #tpu.memory_space<vmem>>, vector<1x32x8xbf16>
    %75 = vector.shape_cast %74 : vector<1x32x8xbf16> to vector<32x8xbf16>
    %cst_58 = arith.constant dense<0.000000e+00> : vector<32x256xf32>
    %76 = tpu.matmul %75, %73, %cst_58 {dimension_numbers = #tpu.dot_dimension_numbers<[1], [0], [0], [1], [0, 0, 1, 1], [], []>} : vector<32x8xbf16>, vector<8x256xbf16>, vector<32x256xf32> -> vector<32x256xf32>
    %77 = arith.addf %66, %76 : vector<32x256xf32>
    %c0_59 = arith.constant 0 : index
    %c0_60 = arith.constant 0 : index
    %c33 = arith.constant 33 : index
    %78 = vector.load %arg1[%c0_59, %c0_60, %c33] : memref<1x8x290xf32, #tpu.memory_space<vmem>>, vector<1x8x256xf32>
    %79 = vector.shape_cast %78 : vector<1x8x256xf32> to vector<8x256xf32>
    %80 = arith.truncf %79 : vector<8x256xf32> to vector<8x256xbf16>
    %c7 = arith.constant 7 : index
    %c0_61 = arith.constant 0 : index
    %c0_62 = arith.constant 0 : index
    %81 = vector.load %arg3[%c7, %c0_61, %c0_62] : memref<9x1x256xbf16, #tpu.memory_space<vmem>>, vector<1x1x256xbf16>
    %82 = vector.shape_cast %81 : vector<1x1x256xbf16> to vector<1x256xbf16>
    %83 = vector.broadcast %82 : vector<1x256xbf16> to vector<8x256xbf16>
    %84 = arith.mulf %80, %83 : vector<8x256xbf16>
    %c7_63 = arith.constant 7 : index
    %c0_64 = arith.constant 0 : index
    %c0_65 = arith.constant 0 : index
    %85 = vector.load %arg2[%c7_63, %c0_64, %c0_65] : memref<9x32x8xbf16, #tpu.memory_space<vmem>>, vector<1x32x8xbf16>
    %86 = vector.shape_cast %85 : vector<1x32x8xbf16> to vector<32x8xbf16>
    %cst_66 = arith.constant dense<0.000000e+00> : vector<32x256xf32>
    %87 = tpu.matmul %86, %84, %cst_66 {dimension_numbers = #tpu.dot_dimension_numbers<[1], [0], [0], [1], [0, 0, 1, 1], [], []>} : vector<32x8xbf16>, vector<8x256xbf16>, vector<32x256xf32> -> vector<32x256xf32>
    %88 = arith.addf %77, %87 : vector<32x256xf32>
    %c0_67 = arith.constant 0 : index
    %c0_68 = arith.constant 0 : index
    %c34 = arith.constant 34 : index
    %89 = vector.load %arg1[%c0_67, %c0_68, %c34] : memref<1x8x290xf32, #tpu.memory_space<vmem>>, vector<1x8x256xf32>
    %90 = vector.shape_cast %89 : vector<1x8x256xf32> to vector<8x256xf32>
    %91 = arith.truncf %90 : vector<8x256xf32> to vector<8x256xbf16>
    %c8 = arith.constant 8 : index
    %c0_69 = arith.constant 0 : index
    %c0_70 = arith.constant 0 : index
    %92 = vector.load %arg3[%c8, %c0_69, %c0_70] : memref<9x1x256xbf16, #tpu.memory_space<vmem>>, vector<1x1x256xbf16>
    %93 = vector.shape_cast %92 : vector<1x1x256xbf16> to vector<1x256xbf16>
    %94 = vector.broadcast %93 : vector<1x256xbf16> to vector<8x256xbf16>
    %95 = arith.mulf %91, %94 : vector<8x256xbf16>
    %c8_71 = arith.constant 8 : index
    %c0_72 = arith.constant 0 : index
    %c0_73 = arith.constant 0 : index
    %96 = vector.load %arg2[%c8_71, %c0_72, %c0_73] : memref<9x32x8xbf16, #tpu.memory_space<vmem>>, vector<1x32x8xbf16>
    %97 = vector.shape_cast %96 : vector<1x32x8xbf16> to vector<32x8xbf16>
    %cst_74 = arith.constant dense<0.000000e+00> : vector<32x256xf32>
    %98 = tpu.matmul %97, %95, %cst_74 {dimension_numbers = #tpu.dot_dimension_numbers<[1], [0], [0], [1], [0, 0, 1, 1], [], []>} : vector<32x8xbf16>, vector<8x256xbf16>, vector<32x256xf32> -> vector<32x256xf32>
    %99 = arith.addf %88, %98 : vector<32x256xf32>
    %c0_75 = arith.constant 0 : index
    %c0_76 = arith.constant 0 : index
    %100 = vector.load %arg4[%c0_75, %c0_76] : memref<32x128xf32, #tpu.memory_space<vmem>>, vector<32x1xf32>
    %101 = vector.broadcast %100 : vector<32x1xf32> to vector<32x256xf32>
    %102 = arith.addf %99, %101 : vector<32x256xf32>
    %c0_77 = arith.constant 0 : index
    %c0_78 = arith.constant 0 : index
    %103 = vector.load %arg5[%c0_77, %c0_78] : memref<32x32xf32, #tpu.memory_space<vmem>>, vector<32x32xf32>
    %cst_79 = arith.constant dense<0.000000e+00> : vector<32xf32>
    %104 = vector.multi_reduction <add>, %102, %cst_79 [1] : vector<32x256xf32> to vector<32xf32>
    %105 = vector.shape_cast %104 : vector<32xf32> to vector<32x1xf32>
    %cst_80 = arith.constant dense<0.000000e+00> : vector<32x1xf32>
    %106 = tpu.matmul %103, %105, %cst_80 {dimension_numbers = #tpu.dot_dimension_numbers<[1], [0], [0], [1], [0, 0, 1, 1], [], []>} : vector<32x32xf32>, vector<32x1xf32>, vector<32x1xf32> -> vector<32x1xf32>
    %107 = vector.broadcast %106 : vector<32x1xf32> to vector<32x256xf32>
    %108 = arith.subf %102, %107 : vector<32x256xf32>
    %109 = arith.mulf %108, %108 : vector<32x256xf32>
    %cst_81 = arith.constant dense<0.000000e+00> : vector<32xf32>
    %110 = vector.multi_reduction <add>, %109, %cst_81 [1] : vector<32x256xf32> to vector<32xf32>
    %111 = vector.shape_cast %110 : vector<32xf32> to vector<32x1xf32>
    %cst_82 = arith.constant dense<0.000000e+00> : vector<32x1xf32>
    %112 = tpu.matmul %103, %111, %cst_82 {dimension_numbers = #tpu.dot_dimension_numbers<[1], [0], [0], [1], [0, 0, 1, 1], [], []>} : vector<32x32xf32>, vector<32x1xf32>, vector<32x1xf32> -> vector<32x1xf32>
    %cst_83 = arith.constant 9.99999974E-6 : f32
    %113 = vector.broadcast %cst_83 : f32 to vector<32x1xf32>
    %114 = arith.addf %112, %113 : vector<32x1xf32>
    %115 = math.rsqrt %114 : vector<32x1xf32>
    %c0_84 = arith.constant 0 : index
    %c1_85 = arith.constant 1 : index
    %116 = vector.load %arg4[%c0_84, %c1_85] : memref<32x128xf32, #tpu.memory_space<vmem>>, vector<32x1xf32>
    %117 = arith.mulf %115, %116 : vector<32x1xf32>
    %118 = vector.broadcast %117 : vector<32x1xf32> to vector<32x256xf32>
    %119 = arith.mulf %108, %118 : vector<32x256xf32>
    %c0_86 = arith.constant 0 : index
    %c2_87 = arith.constant 2 : index
    %120 = vector.load %arg4[%c0_86, %c2_87] : memref<32x128xf32, #tpu.memory_space<vmem>>, vector<32x1xf32>
    %121 = vector.broadcast %120 : vector<32x1xf32> to vector<32x256xf32>
    %122 = arith.addf %119, %121 : vector<32x256xf32>
    %cst_88 = arith.constant 0.000000e+00 : f32
    %123 = vector.broadcast %cst_88 : f32 to vector<32x256xf32>
    %124 = arith.maximumf %122, %123 : vector<32x256xf32>
    %c0_89 = arith.constant 0 : index
    %c0_90 = arith.constant 0 : index
    %c0_91 = arith.constant 0 : index
    %125 = vector.load %arg6[%c0_89, %c0_90, %c0_91] : memref<1x32x256xf32, #tpu.memory_space<vmem>>, vector<1x32x256xf32>
    %126 = vector.shape_cast %125 : vector<1x32x256xf32> to vector<32x256xf32>
    %127 = vector.shape_cast %124 : vector<32x256xf32> to vector<1x32x256xf32>
    tpu.vector_store %arg6[%c0_89, %c0_90, %c0_91], %127 {strides = array<i32>} : memref<1x32x256xf32, #tpu.memory_space<vmem>>, vector<1x32x256xf32>,
    return
  }
  func.func @transform_0(%arg0: i32) -> (i32, i32, i32) {
    %c0_i32 = arith.constant 0 : i32
    %c0_i32_0 = arith.constant 0 : i32
    %c0_i32_1 = arith.constant 0 : i32
    return %arg0, %c0_i32, %c0_i32_0 : i32, i32, i32
  }
  func.func @transform_1(%arg0: i32) -> (i32, i32, i32) {
    %c0_i32 = arith.constant 0 : i32
    %c0_i32_0 = arith.constant 0 : i32
    %c0_i32_1 = arith.constant 0 : i32
    %c0_i32_2 = arith.constant 0 : i32
    return %c0_i32, %c0_i32_0, %c0_i32_1 : i32, i32, i32
  }
  func.func @transform_2(%arg0: i32) -> (i32, i32, i32) {
    %c0_i32 = arith.constant 0 : i32
    %c0_i32_0 = arith.constant 0 : i32
    %c0_i32_1 = arith.constant 0 : i32
    %c0_i32_2 = arith.constant 0 : i32
    return %c0_i32, %c0_i32_0, %c0_i32_1 : i32, i32, i32
  }
  func.func @transform_3(%arg0: i32) -> (i32, i32) {
    %c0_i32 = arith.constant 0 : i32
    %c0_i32_0 = arith.constant 0 : i32
    %c0_i32_1 = arith.constant 0 : i32
    return %c0_i32, %c0_i32_0 : i32, i32
  }
  func.func @transform_4(%arg0: i32) -> (i32, i32) {
    %c0_i32 = arith.constant 0 : i32
    %c0_i32_0 = arith.constant 0 : i32
    %c0_i32_1 = arith.constant 0 : i32
    return %c0_i32, %c0_i32_0 : i32, i32
  }
  func.func @transform_5(%arg0: i32) -> (i32, i32, i32) {
    %c0_i32 = arith.constant 0 : i32
    %c0_i32_0 = arith.constant 0 : i32
    %c0_i32_1 = arith.constant 0 : i32
    return %arg0, %c0_i32, %c0_i32_0 : i32, i32, i32
  }
}

</mosaic_0001>

<llo_original>
// kernel: tpu_custom_call.1
$region0: #{tpu_custom_call.1}
  #allocation0 [shape = 'u32[]', space=smem, size = 0x4, offset = 0x4, fixed_abs, tag = 'smem constant byte address 0x4 - core index']
  #allocation1 [shape = 'u32[144,128]{1,0:T(1,128)}', space=vmem, size = 0x12000, scoped, tag = 'internal scratch']
  %s0 = inlined_call_operand.vmem [shape: f32[2,8,290], index: 0, kind: input, shape index: {}]
  %s1 = inlined_call_operand.vmem [shape: bf16[9,32,8], index: 1, kind: input, shape index: {}]
  %s2 = inlined_call_operand.vmem [shape: bf16[9,1,256], index: 2, kind: input, shape index: {}]
  %s3 = inlined_call_operand.vmem [shape: f32[32,128], index: 3, kind: input, shape index: {}]
  %s4 = inlined_call_operand.vmem [shape: f32[32,32], index: 4, kind: input, shape index: {}]
  %s5 = inlined_call_operand.hbm [shape: f32[2,32,256], index: 5, kind: output, shape index: {}]
  %s6 = sld [smem:[#allocation0]]
  $region53: #{tpu_custom_call.1} parent=0
    _
  %s8 = ssub.s32 1, %s6
  %s9 = scalar_select 0, %s8, %s6
  $region1: #{tpu_custom_call.1} parent=0
    #allocation2 [shape = 'u8[65536]{0}', space=vmem, size = 0x10000, scoped, tag = 'output window, operand 0']
    #allocation3 [shape = 's32[2]{0}', space=sflag, size = 0x8, scoped, tag = 'scoped memory for tpu_custom_call.1']
    %10 = vsyncpa [#allocation3], 0
    %s11 = scalar_lea.sflag [#allocation3], 1
    %12 = vsyncpa %s11, 0
    loop: start=0, step=1, limit=4
    $region2: #{tpu_custom_call.1} parent=1 // loop_pre_header
      _
    $region3: #{tpu_custom_call.1} parent=1 // loop_header
      %s14 = sphi 0, %s18
      %p15 = scmp.ge.s32.totalorder %s14, 4
      %s24 = sphi 0, %s26
      %s27 = sphi 0, %s24
      %s28 = sphi 0, %s27
      %s44 = sphi 0, %s28
      %s48 = sphi 0, %s48
      %s50 = sphi 0, %s48
      %s51 = sphi 0, %s50
      %s65 = sphi 0, %s51
      %s69 = sphi 0, %s69
      %s71 = sphi 0, %s69
      %s72 = sphi 0, %s71
      %s86 = sphi 0, %s72
      %s90 = sphi 0, %s90
      %s92 = sphi 0, %s90
      %s93 = sphi 0, %s92
      %s107 = sphi 0, %s93
      %s111 = sphi 0, %s111
      %s113 = sphi 0, %s111
      %s114 = sphi 0, %s113
      %s128 = sphi 0, %s114
      %s134 = sphi 0, %s136
      %s137 = sphi 0, %s134
      %s138 = sphi 0, %s137
      %s154 = sphi 0, %s138
    $region4: #{tpu_custom_call.1} parent=1 // loop_header_branch
      %17 = sbr.rel (%p15) target = $region8
    $region5: #{tpu_custom_call.1} parent=1 // loop_body
      %s19 = ssub.s32 %s14, 1
      %s20 = ssub.s32 %s14, 2
      %s21 = sadd.s32 %s14, 1
      %s22 = ssub.s32 %s14, %s21
      %p23 = scmp.eq.s32.totalorder %s22, 0
      %s25 = sadd.s32 %s24, 1
      %s26 = scalar_select %p23, %s24, %s25
      %p29 = pneg %p23
      %p30 = scmp.eq.s32.totalorder %s14, 1
      %p31 = por %p29, %p30
      %p32 = scmp.ne.s32.totalorder %s24, %s27
      %p33 = scmp.eq.s32.totalorder %s14, 0
      %p34 = por %p32, %p33
      %p35 = scmp.ne.s32.totalorder %s24, %s27
      %p36 = scmp.eq.s32.totalorder %s19, 1
      %p37 = por %p35, %p36
      %p38 = scmp.ne.s32.totalorder %s27, %s28
      %p39 = scmp.eq.s32.totalorder %s19, 0
      %p40 = por %p38, %p39
      %p41 = scmp.ne.s32.totalorder %s27, %s28
      %p42 = scmp.eq.s32.totalorder %s20, 1
      %p43 = por %p41, %p42
      %p45 = scmp.ne.s32.totalorder %s28, %s44
      %p46 = scmp.eq.s32.totalorder %s20, 0
      %p47 = por %p45, %p46
      %s49 = sadd.s32 %s48, 1
      %p52 = scmp.eq.s32.totalorder %s14, 1
      %p53 = scmp.ne.s32.totalorder %s48, %s50
      %p54 = scmp.eq.s32.totalorder %s14, 0
      %p55 = por %p53, %p54
      %p56 = scmp.ne.s32.totalorder %s48, %s50
      %p57 = scmp.eq.s32.totalorder %s19, 1
      %p58 = por %p56, %p57
      %p59 = scmp.ne.s32.totalorder %s50, %s51
      %p60 = scmp.eq.s32.totalorder %s19, 0
      %p61 = por %p59, %p60
      %p62 = scmp.ne.s32.totalorder %s50, %s51
      %p63 = scmp.eq.s32.totalorder %s20, 1
      %p64 = por %p62, %p63
      %p66 = scmp.ne.s32.totalorder %s51, %s65
      %p67 = scmp.eq.s32.totalorder %s20, 0
      %p68 = por %p66, %p67
      %s70 = sadd.s32 %s69, 1
      %p73 = scmp.eq.s32.totalorder %s14, 1
      %p74 = scmp.ne.s32.totalorder %s69, %s71
      %p75 = scmp.eq.s32.totalorder %s14, 0
      %p76 = por %p74, %p75
      %p77 = scmp.ne.s32.totalorder %s69, %s71
      %p78 = scmp.eq.s32.totalorder %s19, 1
      %p79 = por %p77, %p78
      %p80 = scmp.ne.s32.totalorder %s71, %s72
      %p81 = scmp.eq.s32.totalorder %s19, 0
      %p82 = por %p80, %p81
      %p83 = scmp.ne.s32.totalorder %s71, %s72
      %p84 = scmp.eq.s32.totalorder %s20, 1
      %p85 = por %p83, %p84
      %p87 = scmp.ne.s32.totalorder %s72, %s86
      %p88 = scmp.eq.s32.totalorder %s20, 0
      %p89 = por %p87, %p88
      %s91 = sadd.s32 %s90, 1
      %p94 = scmp.eq.s32.totalorder %s14, 1
      %p95 = scmp.ne.s32.totalorder %s90, %s92
      %p96 = scmp.eq.s32.totalorder %s14, 0
      %p97 = por %p95, %p96
      %p98 = scmp.ne.s32.totalorder %s90, %s92
      %p99 = scmp.eq.s32.totalorder %s19, 1
      %p100 = por %p98, %p99
      %p101 = scmp.ne.s32.totalorder %s92, %s93
      %p102 = scmp.eq.s32.totalorder %s19, 0
      %p103 = por %p101, %p102
      %p104 = scmp.ne.s32.totalorder %s92, %s93
      %p105 = scmp.eq.s32.totalorder %s20, 1
      %p106 = por %p104, %p105
      %p108 = scmp.ne.s32.totalorder %s93, %s107
      %p109 = scmp.eq.s32.totalorder %s20, 0
      %p110 = por %p108, %p109
      %s112 = sadd.s32 %s111, 1
      %p115 = scmp.eq.s32.totalorder %s14, 1
      %p116 = scmp.ne.s32.totalorder %s111, %s113
      %p117 = scmp.eq.s32.totalorder %s14, 0
      %p118 = por %p116, %p117
      %p119 = scmp.ne.s32.totalorder %s111, %s113
      %p120 = scmp.eq.s32.totalorder %s19, 1
      %p121 = por %p119, %p120
      %p122 = scmp.ne.s32.totalorder %s113, %s114
      %p123 = scmp.eq.s32.totalorder %s19, 0
      %p124 = por %p122, %p123
      %p125 = scmp.ne.s32.totalorder %s113, %s114
      %p126 = scmp.eq.s32.totalorder %s20, 1
      %p127 = por %p125, %p126
      %p129 = scmp.ne.s32.totalorder %s114, %s128
      %p130 = scmp.eq.s32.totalorder %s20, 0
      %p131 = por %p129, %p130
      %s132 = ssub.s32 %s14, %s21
      %p133 = scmp.eq.s32.totalorder %s132, 0
      %s135 = sadd.s32 %s134, 1
      %s136 = scalar_select %p133, %s134, %s135
      %p139 = pneg %p133
      %p140 = scmp.eq.s32.totalorder %s14, 1
      %p141 = por %p139, %p140
      %p142 = scmp.ne.s32.totalorder %s134, %s137
      %p143 = scmp.eq.s32.totalorder %s14, 0
      %p144 = por %p142, %p143
      %p145 = scmp.ne.s32.totalorder %s134, %s137
      %p146 = scmp.eq.s32.totalorder %s19, 1
      %p147 = por %p145, %p146
      %p148 = scmp.ne.s32.totalorder %s137, %s138
      %p149 = scmp.eq.s32.totalorder %s19, 0
      %p150 = por %p148, %p149
      %p151 = scmp.ne.s32.totalorder %s137, %s138
      %p152 = scmp.eq.s32.totalorder %s20, 1
      %p153 = por %p151, %p152
      %p155 = scmp.ne.s32.totalorder %s138, %s154
      %p156 = scmp.eq.s32.totalorder %s20, 0
      %p157 = por %p155, %p156
      %p158 = scmp.le.s32.totalorder 1, %s14
      %p159 = scmp.lt.s32.totalorder %s14, 3
      %p160 = pnand %p158, %p159
      %p161 = pneg %p160
      // Predicated region
      $region9: #{tpu_custom_call.1} parent=5 // pred_check
        _
      $region10: #{tpu_custom_call.1} parent=5 // pred_check_branch
        %163 = sbr.rel (%p160) target = $region12
      $region11: #{tpu_custom_call.1} parent=5 // pred_region
        %s164 = ssub.s32 %s14, 1
        // Predicated region
        $region13: #{tpu_custom_call.1} parent=11 // pred_check
          %p165 = pneg %p61
        $region14: #{tpu_custom_call.1} parent=11 // pred_check_branch
          %167 = sbr.rel (%p165) target = $region16
        $region15: #{tpu_custom_call.1} parent=11 // pred_region
          _
        $region16: #{tpu_custom_call.1} parent=11 // pred_fallthru
          _
        // Predicated region
        $region17: #{tpu_custom_call.1} parent=11 // pred_check
          %p168 = pneg %p82
        $region18: #{tpu_custom_call.1} parent=11 // pred_check_branch
          %170 = sbr.rel (%p168) target = $region20
        $region19: #{tpu_custom_call.1} parent=11 // pred_region
          _
        $region20: #{tpu_custom_call.1} parent=11 // pred_fallthru
          _
        // Predicated region
        $region21: #{tpu_custom_call.1} parent=11 // pred_check
          %p171 = pneg %p103
        $region22: #{tpu_custom_call.1} parent=11 // pred_check_branch
          %173 = sbr.rel (%p171) target = $region24
        $region23: #{tpu_custom_call.1} parent=11 // pred_region
          _
        $region24: #{tpu_custom_call.1} parent=11 // pred_fallthru
          _
        // Predicated region
        $region25: #{tpu_custom_call.1} parent=11 // pred_check
          %p174 = pneg %p124
        $region26: #{tpu_custom_call.1} parent=11 // pred_check_branch
          %176 = sbr.rel (%p174) target = $region28
        $region27: #{tpu_custom_call.1} parent=11 // pred_region
          _
        $region28: #{tpu_custom_call.1} parent=11 // pred_fallthru
          _
      $region12: #{tpu_custom_call.1} parent=5 // pred_fallthru
        _
      %p177 = scmp.lt.s32.totalorder %s14, 2
      // Predicated region
      $region29: #{tpu_custom_call.1} parent=5 // pred_check
        %p178 = pneg %p177
      $region30: #{tpu_custom_call.1} parent=5 // pred_check_branch
        %180 = sbr.rel (%p178) target = $region32
      $region31: #{tpu_custom_call.1} parent=5 // pred_region
        // Predicated region
        $region33: #{tpu_custom_call.1} parent=31 // pred_check
          %p181 = pneg %p34
        $region34: #{tpu_custom_call.1} parent=31 // pred_check_branch
          %183 = sbr.rel (%p181) target = $region36
        $region35: #{tpu_custom_call.1} parent=31 // pred_region
          %p184 = scmp.lt.s32.totalorder %s14, 1
          %s185 = scalar_select %p184, %s14, 1
          %s186 = smul.addr %s185, 3
          %s187 = smul.addr %s186, 8
          %s188 = scalar_lea.vmem %s0, %s187
        $region36: #{tpu_custom_call.1} parent=31 // pred_fallthru
          _
      $region32: #{tpu_custom_call.1} parent=5 // pred_fallthru
        _
      %p189 = scmp.le.s32.totalorder 1, %s14
      %p190 = scmp.lt.s32.totalorder %s14, 3
      %p191 = pnand %p189, %p190
      %p192 = pneg %p191
      // Predicated region
      $region37: #{tpu_custom_call.1} parent=5 // pred_check
        _
      $region38: #{tpu_custom_call.1} parent=5 // pred_check_branch
        %194 = sbr.rel (%p191) target = $region40
      $region39: #{tpu_custom_call.1} parent=5 // pred_region
        %s195 = ssub.s32 %s14, 1
        %p196 = scmp.lt.s32.totalorder %s19, 1
        %s197 = scalar_select %p196, %s19, 1
        %s198 = smul.addr %s197, 3
        %s199 = smul.addr %s198, 8
        %s200 = scalar_lea.vmem %s0, %s199
        %p201 = pneg %p40
        %p202 = pneg %p37
        %p203 = pneg %p61
        %p204 = pneg %p58
        %p205 = pneg %p82
        %p206 = pneg %p79
        %p207 = pneg %p103
        %p208 = pneg %p100
        %p209 = pneg %p124
        %p210 = pneg %p121
        %p211 = pneg %p150
        %p212 = pneg %p147
        %s213 = sand.u32 %s137, 1
        %s214 = scalar_lea.sflag [#allocation3], %s213
        %s215 = sand.u32 %s137, 1
        %s216 = smul.addr %s215, 64
        %s217 = scalar_lea.vmem [#allocation2], %s216
        %p218 = scmp.lt.s32.totalorder %s19, 1
        %s219 = scalar_select %p218, %s19, 1
        %s220 = smul.addr %s219, 3
        %s221 = smul.addr %s220, 8
        %s222 = scalar_lea.vmem %s0, %s221
        %v224 = vld [vmem:[%s222] sm:$0xff]
        %v225 = vld [vmem:[%s222 + $0x8] sm:$0xff]
        %v226 = vpack.c.bf16 %v224, %v224
        %v227 = vpack.c.bf16 %v225, %v225
        %v228 = vld [vmem:[%s2] sm:$0x3]
        %v231 = vunpack.c.l.s4 1966171168
        %v232 = vunpack.c.0.s8 %v231
        %v233 = vlaneseq
        %v234 = vshrl.u32 %v233, 7
        %v235 = vsub.s32 %v232, %v234
        %v236 = vrot.slane %v228, %v235
        %v237 = vcombine.high %v236, %v236
        %v239 = vunpack.c.l.s4 1966171168
        %v240 = vunpack.c.0.s8 %v239
        %v241 = vlaneseq
        %v242 = vshrl.u32 %v241, 7
        %v243 = vsub.s32 %v240, %v242
        %v244 = vrot.slane %v236, %v243
        %v246 = vunpack.c.l.s4 1966171168
        %v247 = vunpack.c.0.s8 %v246
        %v248 = vlaneseq
        %v249 = vshrl.u32 %v248, 7
        %v250 = vsub.s32 %v247, %v249
        %v251 = vrot.slane %v237, %v250
        %v253 = vpack.i.b16 %v244, %v244
        %v255 = vlaneseq
        %v256 = vshrl.u32 %v255, 7
        %v257 = vsub.s32 0, %v256
        %v258 = vrot.slane %v253, %v257
        %v260 = vpack.i.b16 %v251, %v251
        %v262 = vlaneseq
        %v263 = vshrl.u32 %v262, 7
        %v264 = vsub.s32 0, %v263
        %v265 = vrot.slane %v260, %v264
        %v266 = vmul.bf16 %v226, %v258
        %v267 = vmul.bf16 %v227, %v265
        %v268 = vld [vmem:[%s1] sm:$0xf]
        %v269 = vld [vmem:[%s1 + $0x4] sm:$0xf]
        %v270 = vld [vmem:[%s1 + $0x8] sm:$0xf]
        %v271 = vld [vmem:[%s1 + $0xc] sm:$0xf]
        %v272 = vld [vmem:[%s222 + $0x10] sm:$0xff]
        %v273 = vpack.c.bf16 %v272, %v272
        %s274 = scalar_lea.vmem %s2, 2
        %v275 = vld [vmem:[%s274] sm:$0x3]
        %v278 = vunpack.c.l.s4 1966171168
        %v279 = vunpack.c.0.s8 %v278
        %v280 = vlaneseq
        %v281 = vshrl.u32 %v280, 7
        %v282 = vsub.s32 %v279, %v281
        %v283 = vrot.slane %v275, %v282
        %v284 = vcombine.high %v283, %v283
        %v286 = vunpack.c.l.s4 1966171168
        %v287 = vunpack.c.0.s8 %v286
        %v288 = vlaneseq
        %v289 = vshrl.u32 %v288, 7
        %v290 = vsub.s32 %v287, %v289
        %v291 = vrot.slane %v283, %v290
        %v293 = vunpack.c.l.s4 1966171168
        %v294 = vunpack.c.0.s8 %v293
        %v295 = vlaneseq
        %v296 = vshrl.u32 %v295, 7
        %v297 = vsub.s32 %v294, %v296
        %v298 = vrot.slane %v284, %v297
        %v300 = vpack.i.b16 %v291, %v291
        %v302 = vlaneseq
        %v303 = vshrl.u32 %v302, 7
        %v304 = vsub.s32 0, %v303
        %v305 = vrot.slane %v300, %v304
        %v307 = vpack.i.b16 %v298, %v298
        %v309 = vlaneseq
        %v310 = vshrl.u32 %v309, 7
        %v311 = vsub.s32 0, %v310
        %v312 = vrot.slane %v307, %v311
        %315 = vrot.lane.b32.xlu0 %v305, 1
        %v316 = vpop.permute.xlu0 %315
        %317 = vrot.lane.b32.xlu0 %v312, 1
        %v318 = vpop.permute.xlu0 %317
        %vm319 = vcmask 7168
        %v320 = vsel %vm319, %v316, %v318
        %v324 = vmul.bf16 %v226, %v316
        %v325 = vmul.bf16 %v227, %v320
        %v326 = vmul.bf16 %v273, %v318
        %s327 = scalar_lea.vmem %s1, 16
        %v328 = vld [vmem:[%s327] sm:$0xf]
        %v329 = vld [vmem:[%s327 + $0x4] sm:$0xf]
        %v330 = vld [vmem:[%s327 + $0x8] sm:$0xf]
        %v331 = vld [vmem:[%s327 + $0xc] sm:$0xf]
        %v336 = vunpack.c.l.b16 %v328
        %v337 = vunpack.c.l.b16 %v329
        %v338 = vunpack.c.l.b16 %v330
        %v339 = vunpack.c.l.b16 %v331
        %v340 = vpack.c.b16 %v337, %v336
        %v341 = vpack.c.b16 %v339, %v338
        %345 = vrot.lane.b32.xlu0 %v324, 127
        %v346 = vpop.permute.xlu0 %345
        %347 = vrot.lane.b32.xlu0 %v325, 127
        %v348 = vpop.permute.xlu0 %347
        %349 = vrot.lane.b32.xlu0 %v326, 127
        %v350 = vpop.permute.xlu0 %349
        %vm351 = vcmask 1039360
        %v352 = vsel %vm351, %v346, %v348
        %v353 = vsel %vm351, %v348, %v350
        %vm354 = vcmask 64512
        %v356 = vsel %vm354, %v340, 0
        %v359 = vsel %vm354, %v341, 0
        %vm361 = vcmask 1043456
        %v363 = vsel %vm361, %v352, 0
        %v366 = vsel %vm361, %v353, 0
        %368 = vmatprep.subr.bf16.mxu0 0
        %369 = vmatpush1.bf16.msra.mxu0 0
        %370 = vmatprep.subr.bf16.mxu0 0
        %371 = vmatpush1.bf16.msra.mxu0 0
        %372 = vmatprep.subr.bf16.mxu0 0
        %373 = vmatpush1.bf16.msra.mxu0 0
        %374 = vmatprep.subr.bf16.mxu0 0
        %375 = vmatpush1.bf16.msra.mxu0 0
        %376 = vmatprep.subr.bf16.mxu0 0
        %377 = vmatpush1.bf16.msra.mxu0 0
        %378 = vmatprep.subr.bf16.mxu0 0
        %379 = vmatpush1.bf16.msra.mxu0 0
        %380 = vmatprep.subr.bf16.mxu0 0
        %381 = vmatpush1.bf16.msra.mxu0 0
        %382 = vmatprep.subr.bf16.mxu0 %v366
        %383 = vmatpush1.bf16.msra.mxu0 %v363
        %384 = vmatprep.subr.bf16.mxu0 0
        %385 = vmatpush2.bf16.msra.mxu0 0
        %386 = vmatprep.subr.bf16.mxu0 0
        %387 = vmatpush2.bf16.msra.mxu0 0
        %388 = vmatprep.subr.bf16.mxu0 0
        %389 = vmatpush2.bf16.msra.mxu0 0
        %390 = vmatprep.subr.bf16.mxu0 0
        %391 = vmatpush2.bf16.msra.mxu0 0
        %392 = vmatprep.subr.bf16.mxu0 0
        %393 = vmatpush2.bf16.msra.mxu0 0
        %394 = vmatprep.subr.bf16.mxu0 0
        %395 = vmatpush2.bf16.msra.mxu0 0
        %396 = vmatprep.subr.bf16.mxu0 0
        %397 = vmatpush2.bf16.msra.mxu0 0
        %398 = vmatprep.subr.bf16.mxu0 0
        %399 = vmatpush2.bf16.msra.mxu0 0
        %400 = vmatprep.mubr.bf16.mxu0 0
        %401 = vmatmul.mubr.bf16.gmra.mxu0 %v356
        %v402 = vpop.f32.mrf.mxu0
        %v403 = vadd.f32 0.0, %v402
        %v404 = vpop.f32.mrf.mxu0
        %v405 = vadd.f32 0.0, %v404
        %v406 = vpop.f32.mrf.mxu0
        %v407 = vadd.f32 0.0, %v406
        %v408 = vpop.f32.mrf.mxu0
        %v409 = vadd.f32 0.0, %v408
        %410 = vmatprep.mubr.bf16.mxu0 0
        %411 = vmatmul.mubr.bf16.gmra.mxu0 %v359
        %v412 = vpop.f32.mrf.mxu0
        %v413 = vadd.f32 0.0, %v412
        %v414 = vpop.f32.mrf.mxu0
        %v415 = vadd.f32 0.0, %v414
        %v416 = vpop.f32.mrf.mxu0
        %v417 = vadd.f32 0.0, %v416
        %v418 = vpop.f32.mrf.mxu0
        %v419 = vadd.f32 0.0, %v418
        %420 = vdwg.mxu0
        %v425 = vunpack.c.l.b16 %v268
        %v426 = vunpack.c.l.b16 %v269
        %v427 = vunpack.c.l.b16 %v270
        %v428 = vunpack.c.l.b16 %v271
        %v429 = vpack.c.b16 %v426, %v425
        %v430 = vpack.c.b16 %v428, %v427
        %v432 = vsel %vm354, %v429, 0
        %v435 = vsel %vm354, %v430, 0
        %v438 = vsel %vm361, %v266, 0
        %v441 = vsel %vm361, %v267, 0
        %443 = vmatprep.subr.bf16.mxu0 0
        %444 = vmatpush1.bf16.msra.mxu0 0
        %445 = vmatprep.subr.bf16.mxu0 0
        %446 = vmatpush1.bf16.msra.mxu0 0
        %447 = vmatprep.subr.bf16.mxu0 0
        %448 = vmatpush1.bf16.msra.mxu0 0
        %449 = vmatprep.subr.bf16.mxu0 0
        %450 = vmatpush1.bf16.msra.mxu0 0
        %451 = vmatprep.subr.bf16.mxu0 0
        %452 = vmatpush1.bf16.msra.mxu0 0
        %453 = vmatprep.subr.bf16.mxu0 0
        %454 = vmatpush1.bf16.msra.mxu0 0
        %455 = vmatprep.subr.bf16.mxu0 0
        %456 = vmatpush1.bf16.msra.mxu0 0
        %457 = vmatprep.subr.bf16.mxu0 %v441
        %458 = vmatpush1.bf16.msra.mxu0 %v438
        %459 = vmatprep.subr.bf16.mxu0 0
        %460 = vmatpush2.bf16.msra.mxu0 0
        %461 = vmatprep.subr.bf16.mxu0 0
        %462 = vmatpush2.bf16.msra.mxu0 0
        %463 = vmatprep.subr.bf16.mxu0 0
        %464 = vmatpush2.bf16.msra.mxu0 0
        %465 = vmatprep.subr.bf16.mxu0 0
        %466 = vmatpush2.bf16.msra.mxu0 0
        %467 = vmatprep.subr.bf16.mxu0 0
        %468 = vmatpush2.bf16.msra.mxu0 0
        %469 = vmatprep.subr.bf16.mxu0 0
        %470 = vmatpush2.bf16.msra.mxu0 0
        %471 = vmatprep.subr.bf16.mxu0 0
        %472 = vmatpush2.bf16.msra.mxu0 0
        %473 = vmatprep.subr.bf16.mxu0 0
        %474 = vmatpush2.bf16.msra.mxu0 0
        %475 = vmatprep.mubr.bf16.mxu0 0
        %476 = vmatmul.mubr.bf16.gmra.mxu0 %v432
        %v477 = vpop.f32.mrf.mxu0
        %v478 = vadd.f32 %v403, %v477
        %v479 = vpop.f32.mrf.mxu0
        %v480 = vadd.f32 %v405, %v479
        %v481 = vpop.f32.mrf.mxu0
        %v482 = vadd.f32 %v407, %v481
        %v483 = vpop.f32.mrf.mxu0
        %v484 = vadd.f32 %v409, %v483
        %485 = vmatprep.mubr.bf16.mxu0 0
        %486 = vmatmul.mubr.bf16.gmra.mxu0 %v435
        %v487 = vpop.f32.mrf.mxu0
        %v488 = vadd.f32 %v413, %v487
        %v489 = vpop.f32.mrf.mxu0
        %v490 = vadd.f32 %v415, %v489
        %v491 = vpop.f32.mrf.mxu0
        %v492 = vadd.f32 %v417, %v491
        %v493 = vpop.f32.mrf.mxu0
        %v494 = vadd.f32 %v419, %v493
        %495 = vdwg.mxu0
        %v496 = vld [vmem:[%s222] sm:$0xff]
        %v497 = vld [vmem:[%s222 + $0x8] sm:$0xff]
        %v498 = vld [vmem:[%s222 + $0x10] sm:$0xff]
        %v499 = vpack.c.bf16 %v496, %v496
        %v500 = vpack.c.bf16 %v497, %v497
        %v501 = vpack.c.bf16 %v498, %v498
        %s502 = scalar_lea.vmem %s2, 4
        %v503 = vld [vmem:[%s502] sm:$0x3]
        %v506 = vunpack.c.l.s4 1966171168
        %v507 = vunpack.c.0.s8 %v506
        %v508 = vlaneseq
        %v509 = vshrl.u32 %v508, 7
        %v510 = vsub.s32 %v507, %v509
        %v511 = vrot.slane %v503, %v510
        %v512 = vcombine.high %v511, %v511
        %v514 = vunpack.c.l.s4 1966171168
        %v515 = vunpack.c.0.s8 %v514
        %v516 = vlaneseq
        %v517 = vshrl.u32 %v516, 7
        %v518 = vsub.s32 %v515, %v517
        %v519 = vrot.slane %v511, %v518
        %v521 = vunpack.c.l.s4 1966171168
        %v522 = vunpack.c.0.s8 %v521
        %v523 = vlaneseq
        %v524 = vshrl.u32 %v523, 7
        %v525 = vsub.s32 %v522, %v524
        %v526 = vrot.slane %v512, %v525
        %v528 = vpack.i.b16 %v519, %v519
        %v530 = vlaneseq
        %v531 = vshrl.u32 %v530, 7
        %v532 = vsub.s32 0, %v531
        %v533 = vrot.slane %v528, %v532
        %v535 = vpack.i.b16 %v526, %v526
        %v537 = vlaneseq
        %v538 = vshrl.u32 %v537, 7
        %v539 = vsub.s32 0, %v538
        %v540 = vrot.slane %v535, %v539
        %543 = vrot.lane.b32.xlu0 %v533, 2
        %v544 = vpop.permute.xlu0 %543
        %545 = vrot.lane.b32.xlu0 %v540, 2
        %v546 = vpop.permute.xlu0 %545
        %vm547 = vcmask 15360
        %v548 = vsel %vm547, %v544, %v546
        %v552 = vmul.bf16 %v499, %v544
        %v553 = vmul.bf16 %v500, %v548
        %v554 = vmul.bf16 %v501, %v546
        %s555 = scalar_lea.vmem %s1, 32
        %v556 = vld [vmem:[%s555] sm:$0xf]
        %v557 = vld [vmem:[%s555 + $0x4] sm:$0xf]
        %v558 = vld [vmem:[%s555 + $0x8] sm:$0xf]
        %v559 = vld [vmem:[%s555 + $0xc] sm:$0xf]
        %v564 = vunpack.c.l.b16 %v556
        %v565 = vunpack.c.l.b16 %v557
        %v566 = vunpack.c.l.b16 %v558
        %v567 = vunpack.c.l.b16 %v559
        %v568 = vpack.c.b16 %v565, %v564
        %v569 = vpack.c.b16 %v567, %v566
        %573 = vrot.lane.b32.xlu0 %v552, 126
        %v574 = vpop.permute.xlu0 %573
        %575 = vrot.lane.b32.xlu0 %v553, 126
        %v576 = vpop.permute.xlu0 %575
        %577 = vrot.lane.b32.xlu0 %v554, 126
        %v578 = vpop.permute.xlu0 %577
        %vm579 = vcmask 1031168
        %v580 = vsel %vm579, %v574, %v576
        %v581 = vsel %vm579, %v576, %v578
        %v583 = vsel %vm354, %v568, 0
        %v586 = vsel %vm354, %v569, 0
        %v589 = vsel %vm361, %v580, 0
        %v592 = vsel %vm361, %v581, 0
        %594 = vmatprep.subr.bf16.mxu0 0
        %595 = vmatpush1.bf16.msra.mxu0 0
        %596 = vmatprep.subr.bf16.mxu0 0
        %597 = vmatpush1.bf16.msra.mxu0 0
        %598 = vmatprep.subr.bf16.mxu0 0
        %599 = vmatpush1.bf16.msra.mxu0 0
        %600 = vmatprep.subr.bf16.mxu0 0
        %601 = vmatpush1.bf16.msra.mxu0 0
        %602 = vmatprep.subr.bf16.mxu0 0
        %603 = vmatpush1.bf16.msra.mxu0 0
        %604 = vmatprep.subr.bf16.mxu0 0
        %605 = vmatpush1.bf16.msra.mxu0 0
        %606 = vmatprep.subr.bf16.mxu0 0
        %607 = vmatpush1.bf16.msra.mxu0 0
        %608 = vmatprep.subr.bf16.mxu0 %v592
        %609 = vmatpush1.bf16.msra.mxu0 %v589
        %610 = vmatprep.subr.bf16.mxu0 0
        %611 = vmatpush2.bf16.msra.mxu0 0
        %612 = vmatprep.subr.bf16.mxu0 0
        %613 = vmatpush2.bf16.msra.mxu0 0
        %614 = vmatprep.subr.bf16.mxu0 0
        %615 = vmatpush2.bf16.msra.mxu0 0
        %616 = vmatprep.subr.bf16.mxu0 0
        %617 = vmatpush2.bf16.msra.mxu0 0
        %618 = vmatprep.subr.bf16.mxu0 0
        %619 = vmatpush2.bf16.msra.mxu0 0
        %620 = vmatprep.subr.bf16.mxu0 0
        %621 = vmatpush2.bf16.msra.mxu0 0
        %622 = vmatprep.subr.bf16.mxu0 0
        %623 = vmatpush2.bf16.msra.mxu0 0
        %624 = vmatprep.subr.bf16.mxu0 0
        %625 = vmatpush2.bf16.msra.mxu0 0
        %626 = vmatprep.mubr.bf16.mxu0 0
        %627 = vmatmul.mubr.bf16.gmra.mxu0 %v583
        %v628 = vpop.f32.mrf.mxu0
        %v629 = vadd.f32 0.0, %v628
        %v630 = vpop.f32.mrf.mxu0
        %v631 = vadd.f32 0.0, %v630
        %v632 = vpop.f32.mrf.mxu0
        %v633 = vadd.f32 0.0, %v632
        %v634 = vpop.f32.mrf.mxu0
        %v635 = vadd.f32 0.0, %v634
        %636 = vmatprep.mubr.bf16.mxu0 0
        %637 = vmatmul.mubr.bf16.gmra.mxu0 %v586
        %v638 = vpop.f32.mrf.mxu0
        %v639 = vadd.f32 0.0, %v638
        %v640 = vpop.f32.mrf.mxu0
        %v641 = vadd.f32 0.0, %v640
        %v642 = vpop.f32.mrf.mxu0
        %v643 = vadd.f32 0.0, %v642
        %v644 = vpop.f32.mrf.mxu0
        %v645 = vadd.f32 0.0, %v644
        %646 = vdwg.mxu0
        %v647 = vadd.f32 %v478, %v629
        %v648 = vadd.f32 %v480, %v631
        %v649 = vadd.f32 %v482, %v633
        %v650 = vadd.f32 %v484, %v635
        %v651 = vadd.f32 %v488, %v639
        %v652 = vadd.f32 %v490, %v641
        %v653 = vadd.f32 %v492, %v643
        %v654 = vadd.f32 %v494, %v645
        %v655 = vld [vmem:[%s222] sm:$0xff]
        %v656 = vld [vmem:[%s222 + $0x8] sm:$0xff]
        %v657 = vld [vmem:[%s222 + $0x10] sm:$0xff]
        %v658 = vpack.c.bf16 %v655, %v655
        %v659 = vpack.c.bf16 %v656, %v656
        %v660 = vpack.c.bf16 %v657, %v657
        %s661 = scalar_lea.vmem %s2, 6
        %v662 = vld [vmem:[%s661] sm:$0x3]
        %v665 = vunpack.c.l.s4 1966171168
        %v666 = vunpack.c.0.s8 %v665
        %v667 = vlaneseq
        %v668 = vshrl.u32 %v667, 7
        %v669 = vsub.s32 %v666, %v668
        %v670 = vrot.slane %v662, %v669
        %v671 = vcombine.high %v670, %v670
        %v673 = vunpack.c.l.s4 1966171168
        %v674 = vunpack.c.0.s8 %v673
        %v675 = vlaneseq
        %v676 = vshrl.u32 %v675, 7
        %v677 = vsub.s32 %v674, %v676
        %v678 = vrot.slane %v670, %v677
        %v680 = vunpack.c.l.s4 1966171168
        %v681 = vunpack.c.0.s8 %v680
        %v682 = vlaneseq
        %v683 = vshrl.u32 %v682, 7
        %v684 = vsub.s32 %v681, %v683
        %v685 = vrot.slane %v671, %v684
        %v687 = vpack.i.b16 %v678, %v678
        %v689 = vlaneseq
        %v690 = vshrl.u32 %v689, 7
        %v691 = vsub.s32 0, %v690
        %v692 = vrot.slane %v687, %v691
        %v694 = vpack.i.b16 %v685, %v685
        %v696 = vlaneseq
        %v697 = vshrl.u32 %v696, 7
        %v698 = vsub.s32 0, %v697
        %v699 = vrot.slane %v694, %v698
        %702 = vrot.lane.b32.xlu0 %v692, 16
        %v703 = vpop.permute.xlu0 %702
        %704 = vrot.lane.b32.xlu0 %v699, 16
        %v705 = vpop.permute.xlu0 %704
        %vm706 = vcmask 130048
        %v707 = vsel %vm706, %v703, %v705
        %v711 = vmul.bf16 %v658, %v703
        %v712 = vmul.bf16 %v659, %v707
        %v713 = vmul.bf16 %v660, %v705
        %s714 = scalar_lea.vmem %s1, 48
        %v715 = vld [vmem:[%s714] sm:$0xf]
        %v716 = vld [vmem:[%s714 + $0x4] sm:$0xf]
        %v717 = vld [vmem:[%s714 + $0x8] sm:$0xf]
        %v718 = vld [vmem:[%s714 + $0xc] sm:$0xf]
        %v723 = vunpack.c.l.b16 %v715
        %v724 = vunpack.c.l.b16 %v716
        %v725 = vunpack.c.l.b16 %v717
        %v726 = vunpack.c.l.b16 %v718
        %v727 = vpack.c.b16 %v724, %v723
        %v728 = vpack.c.b16 %v726, %v725
        %732 = vrot.lane.b32.xlu0 %v711, 112
        %v733 = vpop.permute.xlu0 %732
        %734 = vrot.lane.b32.xlu0 %v712, 112
        %v735 = vpop.permute.xlu0 %734
        %736 = vrot.lane.b32.xlu0 %v713, 112
        %v737 = vpop.permute.xlu0 %736
        %vm738 = vcmask 916480
        %v739 = vsel %vm738, %v733, %v735
        %v740 = vsel %vm738, %v735, %v737
        %v742 = vsel %vm354, %v727, 0
        %v745 = vsel %vm354, %v728, 0
        %v748 = vsel %vm361, %v739, 0
        %v751 = vsel %vm361, %v740, 0
        %753 = vmatprep.subr.bf16.mxu0 0
        %754 = vmatpush1.bf16.msra.mxu0 0
        %755 = vmatprep.subr.bf16.mxu0 0
        %756 = vmatpush1.bf16.msra.mxu0 0
        %757 = vmatprep.subr.bf16.mxu0 0
        %758 = vmatpush1.bf16.msra.mxu0 0
        %759 = vmatprep.subr.bf16.mxu0 0
        %760 = vmatpush1.bf16.msra.mxu0 0
        %761 = vmatprep.subr.bf16.mxu0 0
        %762 = vmatpush1.bf16.msra.mxu0 0
        %763 = vmatprep.subr.bf16.mxu0 0
        %764 = vmatpush1.bf16.msra.mxu0 0
        %765 = vmatprep.subr.bf16.mxu0 0
        %766 = vmatpush1.bf16.msra.mxu0 0
        %767 = vmatprep.subr.bf16.mxu0 %v751
        %768 = vmatpush1.bf16.msra.mxu0 %v748
        %769 = vmatprep.subr.bf16.mxu0 0
        %770 = vmatpush2.bf16.msra.mxu0 0
        %771 = vmatprep.subr.bf16.mxu0 0
        %772 = vmatpush2.bf16.msra.mxu0 0
        %773 = vmatprep.subr.bf16.mxu0 0
        %774 = vmatpush2.bf16.msra.mxu0 0
        %775 = vmatprep.subr.bf16.mxu0 0
        %776 = vmatpush2.bf16.msra.mxu0 0
        %777 = vmatprep.subr.bf16.mxu0 0
        %778 = vmatpush2.bf16.msra.mxu0 0
        %779 = vmatprep.subr.bf16.mxu0 0
        %780 = vmatpush2.bf16.msra.mxu0 0
        %781 = vmatprep.subr.bf16.mxu0 0
        %782 = vmatpush2.bf16.msra.mxu0 0
        %783 = vmatprep.subr.bf16.mxu0 0
        %784 = vmatpush2.bf16.msra.mxu0 0
        %785 = vmatprep.mubr.bf16.mxu0 0
        %786 = vmatmul.mubr.bf16.gmra.mxu0 %v742
        %v787 = vpop.f32.mrf.mxu0
        %v788 = vadd.f32 0.0, %v787
        %v789 = vpop.f32.mrf.mxu0
        %v790 = vadd.f32 0.0, %v789
        %v791 = vpop.f32.mrf.mxu0
        %v792 = vadd.f32 0.0, %v791
        %v793 = vpop.f32.mrf.mxu0
        %v794 = vadd.f32 0.0, %v793
        %795 = vmatprep.mubr.bf16.mxu0 0
        %796 = vmatmul.mubr.bf16.gmra.mxu0 %v745
        %v797 = vpop.f32.mrf.mxu0
        %v798 = vadd.f32 0.0, %v797
        %v799 = vpop.f32.mrf.mxu0
        %v800 = vadd.f32 0.0, %v799
        %v801 = vpop.f32.mrf.mxu0
        %v802 = vadd.f32 0.0, %v801
        %v803 = vpop.f32.mrf.mxu0
        %v804 = vadd.f32 0.0, %v803
        %805 = vdwg.mxu0
        %v806 = vadd.f32 %v647, %v788
        %v807 = vadd.f32 %v648, %v790
        %v808 = vadd.f32 %v649, %v792
        %v809 = vadd.f32 %v650, %v794
        %v810 = vadd.f32 %v651, %v798
        %v811 = vadd.f32 %v652, %v800
        %v812 = vadd.f32 %v653, %v802
        %v813 = vadd.f32 %v654, %v804
        %v814 = vld [vmem:[%s222] sm:$0xff]
        %v815 = vld [vmem:[%s222 + $0x8] sm:$0xff]
        %v816 = vld [vmem:[%s222 + $0x10] sm:$0xff]
        %v817 = vpack.c.bf16 %v814, %v814
        %v818 = vpack.c.bf16 %v815, %v815
        %v819 = vpack.c.bf16 %v816, %v816
        %s820 = scalar_lea.vmem %s2, 8
        %v821 = vld [vmem:[%s820] sm:$0x3]
        %v824 = vunpack.c.l.s4 1966171168
        %v825 = vunpack.c.0.s8 %v824
        %v826 = vlaneseq
        %v827 = vshrl.u32 %v826, 7
        %v828 = vsub.s32 %v825, %v827
        %v829 = vrot.slane %v821, %v828
        %v830 = vcombine.high %v829, %v829
        %v832 = vunpack.c.l.s4 1966171168
        %v833 = vunpack.c.0.s8 %v832
        %v834 = vlaneseq
        %v835 = vshrl.u32 %v834, 7
        %v836 = vsub.s32 %v833, %v835
        %v837 = vrot.slane %v829, %v836
        %v839 = vunpack.c.l.s4 1966171168
        %v840 = vunpack.c.0.s8 %v839
        %v841 = vlaneseq
        %v842 = vshrl.u32 %v841, 7
        %v843 = vsub.s32 %v840, %v842
        %v844 = vrot.slane %v830, %v843
        %v846 = vpack.i.b16 %v837, %v837
        %v848 = vlaneseq
        %v849 = vshrl.u32 %v848, 7
        %v850 = vsub.s32 0, %v849
        %v851 = vrot.slane %v846, %v850
        %v853 = vpack.i.b16 %v844, %v844
        %v855 = vlaneseq
        %v856 = vshrl.u32 %v855, 7
        %v857 = vsub.s32 0, %v856
        %v858 = vrot.slane %v853, %v857
        %861 = vrot.lane.b32.xlu0 %v851, 17
        %v862 = vpop.permute.xlu0 %861
        %863 = vrot.lane.b32.xlu0 %v858, 17
        %v864 = vpop.permute.xlu0 %863
        %vm865 = vcmask 138240
        %v866 = vsel %vm865, %v862, %v864
        %v870 = vmul.bf16 %v817, %v862
        %v871 = vmul.bf16 %v818, %v866
        %v872 = vmul.bf16 %v819, %v864
        %s873 = scalar_lea.vmem %s1, 64
        %v874 = vld [vmem:[%s873] sm:$0xf]
        %v875 = vld [vmem:[%s873 + $0x4] sm:$0xf]
        %v876 = vld [vmem:[%s873 + $0x8] sm:$0xf]
        %v877 = vld [vmem:[%s873 + $0xc] sm:$0xf]
        %v882 = vunpack.c.l.b16 %v874
        %v883 = vunpack.c.l.b16 %v875
        %v884 = vunpack.c.l.b16 %v876
        %v885 = vunpack.c.l.b16 %v877
        %v886 = vpack.c.b16 %v883, %v882
        %v887 = vpack.c.b16 %v885, %v884
        %891 = vrot.lane.b32.xlu0 %v870, 111
        %v892 = vpop.permute.xlu0 %891
        %893 = vrot.lane.b32.xlu0 %v871, 111
        %v894 = vpop.permute.xlu0 %893
        %895 = vrot.lane.b32.xlu0 %v872, 111
        %v896 = vpop.permute.xlu0 %895
        %vm897 = vcmask 908288
        %v898 = vsel %vm897, %v892, %v894
        %v899 = vsel %vm897, %v894, %v896
        %v901 = vsel %vm354, %v886, 0
        %v904 = vsel %vm354, %v887, 0
        %v907 = vsel %vm361, %v898, 0
        %v910 = vsel %vm361, %v899, 0
        %912 = vmatprep.subr.bf16.mxu0 0
        %913 = vmatpush1.bf16.msra.mxu0 0
        %914 = vmatprep.subr.bf16.mxu0 0
        %915 = vmatpush1.bf16.msra.mxu0 0
        %916 = vmatprep.subr.bf16.mxu0 0
        %917 = vmatpush1.bf16.msra.mxu0 0
        %918 = vmatprep.subr.bf16.mxu0 0
        %919 = vmatpush1.bf16.msra.mxu0 0
        %920 = vmatprep.subr.bf16.mxu0 0
        %921 = vmatpush1.bf16.msra.mxu0 0
        %922 = vmatprep.subr.bf16.mxu0 0
        %923 = vmatpush1.bf16.msra.mxu0 0
        %924 = vmatprep.subr.bf16.mxu0 0
        %925 = vmatpush1.bf16.msra.mxu0 0
        %926 = vmatprep.subr.bf16.mxu0 %v910
        %927 = vmatpush1.bf16.msra.mxu0 %v907
        %928 = vmatprep.subr.bf16.mxu0 0
        %929 = vmatpush2.bf16.msra.mxu0 0
        %930 = vmatprep.subr.bf16.mxu0 0
        %931 = vmatpush2.bf16.msra.mxu0 0
        %932 = vmatprep.subr.bf16.mxu0 0
        %933 = vmatpush2.bf16.msra.mxu0 0
        %934 = vmatprep.subr.bf16.mxu0 0
        %935 = vmatpush2.bf16.msra.mxu0 0
        %936 = vmatprep.subr.bf16.mxu0 0
        %937 = vmatpush2.bf16.msra.mxu0 0
        %938 = vmatprep.subr.bf16.mxu0 0
        %939 = vmatpush2.bf16.msra.mxu0 0
        %940 = vmatprep.subr.bf16.mxu0 0
        %941 = vmatpush2.bf16.msra.mxu0 0
        %942 = vmatprep.subr.bf16.mxu0 0
        %943 = vmatpush2.bf16.msra.mxu0 0
        %944 = vmatprep.mubr.bf16.mxu0 0
        %945 = vmatmul.mubr.bf16.gmra.mxu0 %v901
        %v946 = vpop.f32.mrf.mxu0
        %v947 = vadd.f32 0.0, %v946
        %v948 = vpop.f32.mrf.mxu0
        %v949 = vadd.f32 0.0, %v948
        %v950 = vpop.f32.mrf.mxu0
        %v951 = vadd.f32 0.0, %v950
        %v952 = vpop.f32.mrf.mxu0
        %v953 = vadd.f32 0.0, %v952
        %954 = vmatprep.mubr.bf16.mxu0 0
        %955 = vmatmul.mubr.bf16.gmra.mxu0 %v904
        %v956 = vpop.f32.mrf.mxu0
        %v957 = vadd.f32 0.0, %v956
        %v958 = vpop.f32.mrf.mxu0
        %v959 = vadd.f32 0.0, %v958
        %v960 = vpop.f32.mrf.mxu0
        %v961 = vadd.f32 0.0, %v960
        %v962 = vpop.f32.mrf.mxu0
        %v963 = vadd.f32 0.0, %v962
        %964 = vdwg.mxu0
        %v965 = vadd.f32 %v806, %v947
        %v966 = vadd.f32 %v807, %v949
        %v967 = vadd.f32 %v808, %v951
        %v968 = vadd.f32 %v809, %v953
        %v969 = vadd.f32 %v810, %v957
        %v970 = vadd.f32 %v811, %v959
        %v971 = vadd.f32 %v812, %v961
        %v972 = vadd.f32 %v813, %v963
        %v973 = vld [vmem:[%s222] sm:$0xff]
        %v974 = vld [vmem:[%s222 + $0x8] sm:$0xff]
        %v975 = vld [vmem:[%s222 + $0x10] sm:$0xff]
        %v976 = vpack.c.bf16 %v973, %v973
        %v977 = vpack.c.bf16 %v974, %v974
        %v978 = vpack.c.bf16 %v975, %v975
        %s979 = scalar_lea.vmem %s2, 10
        %v980 = vld [vmem:[%s979] sm:$0x3]
        %v983 = vunpack.c.l.s4 1966171168
        %v984 = vunpack.c.0.s8 %v983
        %v985 = vlaneseq
        %v986 = vshrl.u32 %v985, 7
        %v987 = vsub.s32 %v984, %v986
        %v988 = vrot.slane %v980, %v987
        %v989 = vcombine.high %v988, %v988
        %v991 = vunpack.c.l.s4 1966171168
        %v992 = vunpack.c.0.s8 %v991
        %v993 = vlaneseq
        %v994 = vshrl.u32 %v993, 7
        %v995 = vsub.s32 %v992, %v994
        %v996 = vrot.slane %v988, %v995
        %v998 = vunpack.c.l.s4 1966171168
        %v999 = vunpack.c.0.s8 %v998
        %v1000 = vlaneseq
        %v1001 = vshrl.u32 %v1000, 7
        %v1002 = vsub.s32 %v999, %v1001
        %v1003 = vrot.slane %v989, %v1002
        %v1005 = vpack.i.b16 %v996, %v996
        %v1007 = vlaneseq
        %v1008 = vshrl.u32 %v1007, 7
        %v1009 = vsub.s32 0, %v1008
        %v1010 = vrot.slane %v1005, %v1009
        %v1012 = vpack.i.b16 %v1003, %v1003
        %v1014 = vlaneseq
        %v1015 = vshrl.u32 %v1014, 7
        %v1016 = vsub.s32 0, %v1015
        %v1017 = vrot.slane %v1012, %v1016
        %1020 = vrot.lane.b32.xlu0 %v1010, 18
        %v1021 = vpop.permute.xlu0 %1020
        %1022 = vrot.lane.b32.xlu0 %v1017, 18
        %v1023 = vpop.permute.xlu0 %1022
        %vm1024 = vcmask 146432
        %v1025 = vsel %vm1024, %v1021, %v1023
        %v1029 = vmul.bf16 %v976, %v1021
        %v1030 = vmul.bf16 %v977, %v1025
        %v1031 = vmul.bf16 %v978, %v1023
        %s1032 = scalar_lea.vmem %s1, 80
        %v1033 = vld [vmem:[%s1032] sm:$0xf]
        %v1034 = vld [vmem:[%s1032 + $0x4] sm:$0xf]
        %v1035 = vld [vmem:[%s1032 + $0x8] sm:$0xf]
        %v1036 = vld [vmem:[%s1032 + $0xc] sm:$0xf]
        %v1041 = vunpack.c.l.b16 %v1033
        %v1042 = vunpack.c.l.b16 %v1034
        %v1043 = vunpack.c.l.b16 %v1035
        %v1044 = vunpack.c.l.b16 %v1036
        %v1045 = vpack.c.b16 %v1042, %v1041
        %v1046 = vpack.c.b16 %v1044, %v1043
        %1050 = vrot.lane.b32.xlu0 %v1029, 110
        %v1051 = vpop.permute.xlu0 %1050
        %1052 = vrot.lane.b32.xlu0 %v1030, 110
        %v1053 = vpop.permute.xlu0 %1052
        %1054 = vrot.lane.b32.xlu0 %v1031, 110
        %v1055 = vpop.permute.xlu0 %1054
        %vm1056 = vcmask 900096
        %v1057 = vsel %vm1056, %v1051, %v1053
        %v1058 = vsel %vm1056, %v1053, %v1055
        %v1060 = vsel %vm354, %v1045, 0
        %v1063 = vsel %vm354, %v1046, 0
        %v1066 = vsel %vm361, %v1057, 0
        %v1069 = vsel %vm361, %v1058, 0
        %1071 = vmatprep.subr.bf16.mxu0 0
        %1072 = vmatpush1.bf16.msra.mxu0 0
        %1073 = vmatprep.subr.bf16.mxu0 0
        %1074 = vmatpush1.bf16.msra.mxu0 0
        %1075 = vmatprep.subr.bf16.mxu0 0
        %1076 = vmatpush1.bf16.msra.mxu0 0
        %1077 = vmatprep.subr.bf16.mxu0 0
        %1078 = vmatpush1.bf16.msra.mxu0 0
        %1079 = vmatprep.subr.bf16.mxu0 0
        %1080 = vmatpush1.bf16.msra.mxu0 0
        %1081 = vmatprep.subr.bf16.mxu0 0
        %1082 = vmatpush1.bf16.msra.mxu0 0
        %1083 = vmatprep.subr.bf16.mxu0 0
        %1084 = vmatpush1.bf16.msra.mxu0 0
        %1085 = vmatprep.subr.bf16.mxu0 %v1069
        %1086 = vmatpush1.bf16.msra.mxu0 %v1066
        %1087 = vmatprep.subr.bf16.mxu0 0
        %1088 = vmatpush2.bf16.msra.mxu0 0
        %1089 = vmatprep.subr.bf16.mxu0 0
        %1090 = vmatpush2.bf16.msra.mxu0 0
        %1091 = vmatprep.subr.bf16.mxu0 0
        %1092 = vmatpush2.bf16.msra.mxu0 0
        %1093 = vmatprep.subr.bf16.mxu0 0
        %1094 = vmatpush2.bf16.msra.mxu0 0
        %1095 = vmatprep.subr.bf16.mxu0 0
        %1096 = vmatpush2.bf16.msra.mxu0 0
        %1097 = vmatprep.subr.bf16.mxu0 0
        %1098 = vmatpush2.bf16.msra.mxu0 0
        %1099 = vmatprep.subr.bf16.mxu0 0
        %1100 = vmatpush2.bf16.msra.mxu0 0
        %1101 = vmatprep.subr.bf16.mxu0 0
        %1102 = vmatpush2.bf16.msra.mxu0 0
        %1103 = vmatprep.mubr.bf16.mxu0 0
        %1104 = vmatmul.mubr.bf16.gmra.mxu0 %v1060
        %v1105 = vpop.f32.mrf.mxu0
        %v1106 = vadd.f32 0.0, %v1105
        %v1107 = vpop.f32.mrf.mxu0
        %v1108 = vadd.f32 0.0, %v1107
        %v1109 = vpop.f32.mrf.mxu0
        %v1110 = vadd.f32 0.0, %v1109
        %v1111 = vpop.f32.mrf.mxu0
        %v1112 = vadd.f32 0.0, %v1111
        %1113 = vmatprep.mubr.bf16.mxu0 0
        %1114 = vmatmul.mubr.bf16.gmra.mxu0 %v1063
        %v1115 = vpop.f32.mrf.mxu0
        %v1116 = vadd.f32 0.0, %v1115
        %v1117 = vpop.f32.mrf.mxu0
        %v1118 = vadd.f32 0.0, %v1117
        %v1119 = vpop.f32.mrf.mxu0
        %v1120 = vadd.f32 0.0, %v1119
        %v1121 = vpop.f32.mrf.mxu0
        %v1122 = vadd.f32 0.0, %v1121
        %1123 = vdwg.mxu0
        %v1124 = vadd.f32 %v965, %v1106
        %v1125 = vadd.f32 %v966, %v1108
        %v1126 = vadd.f32 %v967, %v1110
        %v1127 = vadd.f32 %v968, %v1112
        %v1128 = vadd.f32 %v969, %v1116
        %v1129 = vadd.f32 %v970, %v1118
        %v1130 = vadd.f32 %v971, %v1120
        %v1131 = vadd.f32 %v972, %v1122
        %v1132 = vld [vmem:[%s222] sm:$0xff]
        %v1133 = vld [vmem:[%s222 + $0x8] sm:$0xff]
        %v1134 = vld [vmem:[%s222 + $0x10] sm:$0xff]
        %v1135 = vpack.c.bf16 %v1132, %v1132
        %v1136 = vpack.c.bf16 %v1133, %v1133
        %v1137 = vpack.c.bf16 %v1134, %v1134
        %s1138 = scalar_lea.vmem %s2, 12
        %v1139 = vld [vmem:[%s1138] sm:$0x3]
        %v1142 = vunpack.c.l.s4 1966171168
        %v1143 = vunpack.c.0.s8 %v1142
        %v1144 = vlaneseq
        %v1145 = vshrl.u32 %v1144, 7
        %v1146 = vsub.s32 %v1143, %v1145
        %v1147 = vrot.slane %v1139, %v1146
        %v1148 = vcombine.high %v1147, %v1147
        %v1150 = vunpack.c.l.s4 1966171168
        %v1151 = vunpack.c.0.s8 %v1150
        %v1152 = vlaneseq
        %v1153 = vshrl.u32 %v1152, 7
        %v1154 = vsub.s32 %v1151, %v1153
        %v1155 = vrot.slane %v1147, %v1154
        %v1157 = vunpack.c.l.s4 1966171168
        %v1158 = vunpack.c.0.s8 %v1157
        %v1159 = vlaneseq
        %v1160 = vshrl.u32 %v1159, 7
        %v1161 = vsub.s32 %v1158, %v1160
        %v1162 = vrot.slane %v1148, %v1161
        %v1164 = vpack.i.b16 %v1155, %v1155
        %v1166 = vlaneseq
        %v1167 = vshrl.u32 %v1166, 7
        %v1168 = vsub.s32 0, %v1167
        %v1169 = vrot.slane %v1164, %v1168
        %v1171 = vpack.i.b16 %v1162, %v1162
        %v1173 = vlaneseq
        %v1174 = vshrl.u32 %v1173, 7
        %v1175 = vsub.s32 0, %v1174
        %v1176 = vrot.slane %v1171, %v1175
        %1179 = vrot.lane.b32.xlu0 %v1169, 32
        %v1180 = vpop.permute.xlu0 %1179
        %1181 = vrot.lane.b32.xlu0 %v1176, 32
        %v1182 = vpop.permute.xlu0 %1181
        %vm1183 = vcmask 261120
        %v1184 = vsel %vm1183, %v1180, %v1182
        %v1188 = vmul.bf16 %v1135, %v1180
        %v1189 = vmul.bf16 %v1136, %v1184
        %v1190 = vmul.bf16 %v1137, %v1182
        %s1191 = scalar_lea.vmem %s1, 96
        %v1192 = vld [vmem:[%s1191] sm:$0xf]
        %v1193 = vld [vmem:[%s1191 + $0x4] sm:$0xf]
        %v1194 = vld [vmem:[%s1191 + $0x8] sm:$0xf]
        %v1195 = vld [vmem:[%s1191 + $0xc] sm:$0xf]
        %v1200 = vunpack.c.l.b16 %v1192
        %v1201 = vunpack.c.l.b16 %v1193
        %v1202 = vunpack.c.l.b16 %v1194
        %v1203 = vunpack.c.l.b16 %v1195
        %v1204 = vpack.c.b16 %v1201, %v1200
        %v1205 = vpack.c.b16 %v1203, %v1202
        %1209 = vrot.lane.b32.xlu0 %v1188, 96
        %v1210 = vpop.permute.xlu0 %1209
        %1211 = vrot.lane.b32.xlu0 %v1189, 96
        %v1212 = vpop.permute.xlu0 %1211
        %1213 = vrot.lane.b32.xlu0 %v1190, 96
        %v1214 = vpop.permute.xlu0 %1213
        %vm1215 = vcmask 785408
        %v1216 = vsel %vm1215, %v1210, %v1212
        %v1217 = vsel %vm1215, %v1212, %v1214
        %v1219 = vsel %vm354, %v1204, 0
        %v1222 = vsel %vm354, %v1205, 0
        %v1225 = vsel %vm361, %v1216, 0
        %v1228 = vsel %vm361, %v1217, 0
        %1230 = vmatprep.subr.bf16.mxu0 0
        %1231 = vmatpush1.bf16.msra.mxu0 0
        %1232 = vmatprep.subr.bf16.mxu0 0
        %1233 = vmatpush1.bf16.msra.mxu0 0
        %1234 = vmatprep.subr.bf16.mxu0 0
        %1235 = vmatpush1.bf16.msra.mxu0 0
        %1236 = vmatprep.subr.bf16.mxu0 0
        %1237 = vmatpush1.bf16.msra.mxu0 0
        %1238 = vmatprep.subr.bf16.mxu0 0
        %1239 = vmatpush1.bf16.msra.mxu0 0
        %1240 = vmatprep.subr.bf16.mxu0 0
        %1241 = vmatpush1.bf16.msra.mxu0 0
        %1242 = vmatprep.subr.bf16.mxu0 0
        %1243 = vmatpush1.bf16.msra.mxu0 0
        %1244 = vmatprep.subr.bf16.mxu0 %v1228
        %1245 = vmatpush1.bf16.msra.mxu0 %v1225
        %1246 = vmatprep.subr.bf16.mxu0 0
        %1247 = vmatpush2.bf16.msra.mxu0 0
        %1248 = vmatprep.subr.bf16.mxu0 0
        %1249 = vmatpush2.bf16.msra.mxu0 0
        %1250 = vmatprep.subr.bf16.mxu0 0
        %1251 = vmatpush2.bf16.msra.mxu0 0
        %1252 = vmatprep.subr.bf16.mxu0 0
        %1253 = vmatpush2.bf16.msra.mxu0 0
        %1254 = vmatprep.subr.bf16.mxu0 0
        %1255 = vmatpush2.bf16.msra.mxu0 0
        %1256 = vmatprep.subr.bf16.mxu0 0
        %1257 = vmatpush2.bf16.msra.mxu0 0
        %1258 = vmatprep.subr.bf16.mxu0 0
        %1259 = vmatpush2.bf16.msra.mxu0 0
        %1260 = vmatprep.subr.bf16.mxu0 0
        %1261 = vmatpush2.bf16.msra.mxu0 0
        %1262 = vmatprep.mubr.bf16.mxu0 0
        %1263 = vmatmul.mubr.bf16.gmra.mxu0 %v1219
        %v1264 = vpop.f32.mrf.mxu0
        %v1265 = vadd.f32 0.0, %v1264
        %v1266 = vpop.f32.mrf.mxu0
        %v1267 = vadd.f32 0.0, %v1266
        %v1268 = vpop.f32.mrf.mxu0
        %v1269 = vadd.f32 0.0, %v1268
        %v1270 = vpop.f32.mrf.mxu0
        %v1271 = vadd.f32 0.0, %v1270
        %1272 = vmatprep.mubr.bf16.mxu0 0
        %1273 = vmatmul.mubr.bf16.gmra.mxu0 %v1222
        %v1274 = vpop.f32.mrf.mxu0
        %v1275 = vadd.f32 0.0, %v1274
        %v1276 = vpop.f32.mrf.mxu0
        %v1277 = vadd.f32 0.0, %v1276
        %v1278 = vpop.f32.mrf.mxu0
        %v1279 = vadd.f32 0.0, %v1278
        %v1280 = vpop.f32.mrf.mxu0
        %v1281 = vadd.f32 0.0, %v1280
        %1282 = vdwg.mxu0
        %v1283 = vadd.f32 %v1124, %v1265
        %v1284 = vadd.f32 %v1125, %v1267
        %v1285 = vadd.f32 %v1126, %v1269
        %v1286 = vadd.f32 %v1127, %v1271
        %v1287 = vadd.f32 %v1128, %v1275
        %v1288 = vadd.f32 %v1129, %v1277
        %v1289 = vadd.f32 %v1130, %v1279
        %v1290 = vadd.f32 %v1131, %v1281
        %v1291 = vld [vmem:[%s222] sm:$0xff]
        %v1292 = vld [vmem:[%s222 + $0x8] sm:$0xff]
        %v1293 = vld [vmem:[%s222 + $0x10] sm:$0xff]
        %v1294 = vpack.c.bf16 %v1291, %v1291
        %v1295 = vpack.c.bf16 %v1292, %v1292
        %v1296 = vpack.c.bf16 %v1293, %v1293
        %s1297 = scalar_lea.vmem %s2, 14
        %v1298 = vld [vmem:[%s1297] sm:$0x3]
        %v1301 = vunpack.c.l.s4 1966171168
        %v1302 = vunpack.c.0.s8 %v1301
        %v1303 = vlaneseq
        %v1304 = vshrl.u32 %v1303, 7
        %v1305 = vsub.s32 %v1302, %v1304
        %v1306 = vrot.slane %v1298, %v1305
        %v1307 = vcombine.high %v1306, %v1306
        %v1309 = vunpack.c.l.s4 1966171168
        %v1310 = vunpack.c.0.s8 %v1309
        %v1311 = vlaneseq
        %v1312 = vshrl.u32 %v1311, 7
        %v1313 = vsub.s32 %v1310, %v1312
        %v1314 = vrot.slane %v1306, %v1313
        %v1316 = vunpack.c.l.s4 1966171168
        %v1317 = vunpack.c.0.s8 %v1316
        %v1318 = vlaneseq
        %v1319 = vshrl.u32 %v1318, 7
        %v1320 = vsub.s32 %v1317, %v1319
        %v1321 = vrot.slane %v1307, %v1320
        %v1323 = vpack.i.b16 %v1314, %v1314
        %v1325 = vlaneseq
        %v1326 = vshrl.u32 %v1325, 7
        %v1327 = vsub.s32 0, %v1326
        %v1328 = vrot.slane %v1323, %v1327
        %v1330 = vpack.i.b16 %v1321, %v1321
        %v1332 = vlaneseq
        %v1333 = vshrl.u32 %v1332, 7
        %v1334 = vsub.s32 0, %v1333
        %v1335 = vrot.slane %v1330, %v1334
        %1338 = vrot.lane.b32.xlu0 %v1328, 33
        %v1339 = vpop.permute.xlu0 %1338
        %1340 = vrot.lane.b32.xlu0 %v1335, 33
        %v1341 = vpop.permute.xlu0 %1340
        %vm1342 = vcmask 269312
        %v1343 = vsel %vm1342, %v1339, %v1341
        %v1347 = vmul.bf16 %v1294, %v1339
        %v1348 = vmul.bf16 %v1295, %v1343
        %v1349 = vmul.bf16 %v1296, %v1341
        %s1350 = scalar_lea.vmem %s1, 112
        %v1351 = vld [vmem:[%s1350] sm:$0xf]
        %v1352 = vld [vmem:[%s1350 + $0x4] sm:$0xf]
        %v1353 = vld [vmem:[%s1350 + $0x8] sm:$0xf]
        %v1354 = vld [vmem:[%s1350 + $0xc] sm:$0xf]
        %v1359 = vunpack.c.l.b16 %v1351
        %v1360 = vunpack.c.l.b16 %v1352
        %v1361 = vunpack.c.l.b16 %v1353
        %v1362 = vunpack.c.l.b16 %v1354
        %v1363 = vpack.c.b16 %v1360, %v1359
        %v1364 = vpack.c.b16 %v1362, %v1361
        %1368 = vrot.lane.b32.xlu0 %v1347, 95
        %v1369 = vpop.permute.xlu0 %1368
        %1370 = vrot.lane.b32.xlu0 %v1348, 95
        %v1371 = vpop.permute.xlu0 %1370
        %1372 = vrot.lane.b32.xlu0 %v1349, 95
        %v1373 = vpop.permute.xlu0 %1372
        %vm1374 = vcmask 777216
        %v1375 = vsel %vm1374, %v1369, %v1371
        %v1376 = vsel %vm1374, %v1371, %v1373
        %v1378 = vsel %vm354, %v1363, 0
        %v1381 = vsel %vm354, %v1364, 0
        %v1384 = vsel %vm361, %v1375, 0
        %v1387 = vsel %vm361, %v1376, 0
        %1389 = vmatprep.subr.bf16.mxu0 0
        %1390 = vmatpush1.bf16.msra.mxu0 0
        %1391 = vmatprep.subr.bf16.mxu0 0
        %1392 = vmatpush1.bf16.msra.mxu0 0
        %1393 = vmatprep.subr.bf16.mxu0 0
        %1394 = vmatpush1.bf16.msra.mxu0 0
        %1395 = vmatprep.subr.bf16.mxu0 0
        %1396 = vmatpush1.bf16.msra.mxu0 0
        %1397 = vmatprep.subr.bf16.mxu0 0
        %1398 = vmatpush1.bf16.msra.mxu0 0
        %1399 = vmatprep.subr.bf16.mxu0 0
        %1400 = vmatpush1.bf16.msra.mxu0 0
        %1401 = vmatprep.subr.bf16.mxu0 0
        %1402 = vmatpush1.bf16.msra.mxu0 0
        %1403 = vmatprep.subr.bf16.mxu0 %v1387
        %1404 = vmatpush1.bf16.msra.mxu0 %v1384
        %1405 = vmatprep.subr.bf16.mxu0 0
        %1406 = vmatpush2.bf16.msra.mxu0 0
        %1407 = vmatprep.subr.bf16.mxu0 0
        %1408 = vmatpush2.bf16.msra.mxu0 0
        %1409 = vmatprep.subr.bf16.mxu0 0
        %1410 = vmatpush2.bf16.msra.mxu0 0
        %1411 = vmatprep.subr.bf16.mxu0 0
        %1412 = vmatpush2.bf16.msra.mxu0 0
        %1413 = vmatprep.subr.bf16.mxu0 0
        %1414 = vmatpush2.bf16.msra.mxu0 0
        %1415 = vmatprep.subr.bf16.mxu0 0
        %1416 = vmatpush2.bf16.msra.mxu0 0
        %1417 = vmatprep.subr.bf16.mxu0 0
        %1418 = vmatpush2.bf16.msra.mxu0 0
        %1419 = vmatprep.subr.bf16.mxu0 0
        %1420 = vmatpush2.bf16.msra.mxu0 0
        %1421 = vmatprep.mubr.bf16.mxu0 0
        %1422 = vmatmul.mubr.bf16.gmra.mxu0 %v1378
        %v1423 = vpop.f32.mrf.mxu0
        %v1424 = vadd.f32 0.0, %v1423
        %v1425 = vpop.f32.mrf.mxu0
        %v1426 = vadd.f32 0.0, %v1425
        %v1427 = vpop.f32.mrf.mxu0
        %v1428 = vadd.f32 0.0, %v1427
        %v1429 = vpop.f32.mrf.mxu0
        %v1430 = vadd.f32 0.0, %v1429
        %1431 = vmatprep.mubr.bf16.mxu0 0
        %1432 = vmatmul.mubr.bf16.gmra.mxu0 %v1381
        %v1433 = vpop.f32.mrf.mxu0
        %v1434 = vadd.f32 0.0, %v1433
        %v1435 = vpop.f32.mrf.mxu0
        %v1436 = vadd.f32 0.0, %v1435
        %v1437 = vpop.f32.mrf.mxu0
        %v1438 = vadd.f32 0.0, %v1437
        %v1439 = vpop.f32.mrf.mxu0
        %v1440 = vadd.f32 0.0, %v1439
        %1441 = vdwg.mxu0
        %v1442 = vadd.f32 %v1283, %v1424
        %v1443 = vadd.f32 %v1284, %v1426
        %v1444 = vadd.f32 %v1285, %v1428
        %v1445 = vadd.f32 %v1286, %v1430
        %v1446 = vadd.f32 %v1287, %v1434
        %v1447 = vadd.f32 %v1288, %v1436
        %v1448 = vadd.f32 %v1289, %v1438
        %v1449 = vadd.f32 %v1290, %v1440
        %v1450 = vld [vmem:[%s222] sm:$0xff]
        %v1451 = vld [vmem:[%s222 + $0x8] sm:$0xff]
        %v1452 = vld [vmem:[%s222 + $0x10] sm:$0xff]
        %v1453 = vpack.c.bf16 %v1450, %v1450
        %v1454 = vpack.c.bf16 %v1451, %v1451
        %v1455 = vpack.c.bf16 %v1452, %v1452
        %s1456 = scalar_lea.vmem %s2, 16
        %v1457 = vld [vmem:[%s1456] sm:$0x3]
        %v1460 = vunpack.c.l.s4 1966171168
        %v1461 = vunpack.c.0.s8 %v1460
        %v1462 = vlaneseq
        %v1463 = vshrl.u32 %v1462, 7
        %v1464 = vsub.s32 %v1461, %v1463
        %v1465 = vrot.slane %v1457, %v1464
        %v1466 = vcombine.high %v1465, %v1465
        %v1468 = vunpack.c.l.s4 1966171168
        %v1469 = vunpack.c.0.s8 %v1468
        %v1470 = vlaneseq
        %v1471 = vshrl.u32 %v1470, 7
        %v1472 = vsub.s32 %v1469, %v1471
        %v1473 = vrot.slane %v1465, %v1472
        %v1475 = vunpack.c.l.s4 1966171168
        %v1476 = vunpack.c.0.s8 %v1475
        %v1477 = vlaneseq
        %v1478 = vshrl.u32 %v1477, 7
        %v1479 = vsub.s32 %v1476, %v1478
        %v1480 = vrot.slane %v1466, %v1479
        %v1482 = vpack.i.b16 %v1473, %v1473
        %v1484 = vlaneseq
        %v1485 = vshrl.u32 %v1484, 7
        %v1486 = vsub.s32 0, %v1485
        %v1487 = vrot.slane %v1482, %v1486
        %v1489 = vpack.i.b16 %v1480, %v1480
        %v1491 = vlaneseq
        %v1492 = vshrl.u32 %v1491, 7
        %v1493 = vsub.s32 0, %v1492
        %v1494 = vrot.slane %v1489, %v1493
        %1497 = vrot.lane.b32.xlu0 %v1487, 34
        %v1498 = vpop.permute.xlu0 %1497
        %1499 = vrot.lane.b32.xlu0 %v1494, 34
        %v1500 = vpop.permute.xlu0 %1499
        %vm1501 = vcmask 277504
        %v1502 = vsel %vm1501, %v1498, %v1500
        %v1506 = vmul.bf16 %v1453, %v1498
        %v1507 = vmul.bf16 %v1454, %v1502
        %v1508 = vmul.bf16 %v1455, %v1500
        %s1509 = scalar_lea.vmem %s1, 128
        %v1510 = vld [vmem:[%s1509] sm:$0xf]
        %v1511 = vld [vmem:[%s1509 + $0x4] sm:$0xf]
        %v1512 = vld [vmem:[%s1509 + $0x8] sm:$0xf]
        %v1513 = vld [vmem:[%s1509 + $0xc] sm:$0xf]
        %v1518 = vunpack.c.l.b16 %v1510
        %v1519 = vunpack.c.l.b16 %v1511
        %v1520 = vunpack.c.l.b16 %v1512
        %v1521 = vunpack.c.l.b16 %v1513
        %v1522 = vpack.c.b16 %v1519, %v1518
        %v1523 = vpack.c.b16 %v1521, %v1520
        %1527 = vrot.lane.b32.xlu0 %v1506, 94
        %v1528 = vpop.permute.xlu0 %1527
        %1529 = vrot.lane.b32.xlu0 %v1507, 94
        %v1530 = vpop.permute.xlu0 %1529
        %1531 = vrot.lane.b32.xlu0 %v1508, 94
        %v1532 = vpop.permute.xlu0 %1531
        %vm1533 = vcmask 769024
        %v1534 = vsel %vm1533, %v1528, %v1530
        %v1535 = vsel %vm1533, %v1530, %v1532
        %v1537 = vsel %vm354, %v1522, 0
        %v1540 = vsel %vm354, %v1523, 0
        %v1543 = vsel %vm361, %v1534, 0
        %v1546 = vsel %vm361, %v1535, 0
        %1548 = vmatprep.subr.bf16.mxu0 0
        %1549 = vmatpush1.bf16.msra.mxu0 0
        %1550 = vmatprep.subr.bf16.mxu0 0
        %1551 = vmatpush1.bf16.msra.mxu0 0
        %1552 = vmatprep.subr.bf16.mxu0 0
        %1553 = vmatpush1.bf16.msra.mxu0 0
        %1554 = vmatprep.subr.bf16.mxu0 0
        %1555 = vmatpush1.bf16.msra.mxu0 0
        %1556 = vmatprep.subr.bf16.mxu0 0
        %1557 = vmatpush1.bf16.msra.mxu0 0
        %1558 = vmatprep.subr.bf16.mxu0 0
        %1559 = vmatpush1.bf16.msra.mxu0 0
        %1560 = vmatprep.subr.bf16.mxu0 0
        %1561 = vmatpush1.bf16.msra.mxu0 0
        %1562 = vmatprep.subr.bf16.mxu0 %v1546
        %1563 = vmatpush1.bf16.msra.mxu0 %v1543
        %1564 = vmatprep.subr.bf16.mxu0 0
        %1565 = vmatpush2.bf16.msra.mxu0 0
        %1566 = vmatprep.subr.bf16.mxu0 0
        %1567 = vmatpush2.bf16.msra.mxu0 0
        %1568 = vmatprep.subr.bf16.mxu0 0
        %1569 = vmatpush2.bf16.msra.mxu0 0
        %1570 = vmatprep.subr.bf16.mxu0 0
        %1571 = vmatpush2.bf16.msra.mxu0 0
        %1572 = vmatprep.subr.bf16.mxu0 0
        %1573 = vmatpush2.bf16.msra.mxu0 0
        %1574 = vmatprep.subr.bf16.mxu0 0
        %1575 = vmatpush2.bf16.msra.mxu0 0
        %1576 = vmatprep.subr.bf16.mxu0 0
        %1577 = vmatpush2.bf16.msra.mxu0 0
        %1578 = vmatprep.subr.bf16.mxu0 0
        %1579 = vmatpush2.bf16.msra.mxu0 0
        %1580 = vmatprep.mubr.bf16.mxu0 0
        %1581 = vmatmul.mubr.bf16.gmra.mxu0 %v1537
        %v1582 = vpop.f32.mrf.mxu0
        %v1583 = vadd.f32 0.0, %v1582
        %v1584 = vpop.f32.mrf.mxu0
        %v1585 = vadd.f32 0.0, %v1584
        %v1586 = vpop.f32.mrf.mxu0
        %v1587 = vadd.f32 0.0, %v1586
        %v1588 = vpop.f32.mrf.mxu0
        %v1589 = vadd.f32 0.0, %v1588
        %1590 = vmatprep.mubr.bf16.mxu0 0
        %1591 = vmatmul.mubr.bf16.gmra.mxu0 %v1540
        %v1592 = vpop.f32.mrf.mxu0
        %v1593 = vadd.f32 0.0, %v1592
        %v1594 = vpop.f32.mrf.mxu0
        %v1595 = vadd.f32 0.0, %v1594
        %v1596 = vpop.f32.mrf.mxu0
        %v1597 = vadd.f32 0.0, %v1596
        %v1598 = vpop.f32.mrf.mxu0
        %v1599 = vadd.f32 0.0, %v1598
        %1600 = vdwg.mxu0
        %v1601 = vadd.f32 %v1442, %v1583
        %v1602 = vadd.f32 %v1443, %v1585
        %v1603 = vadd.f32 %v1444, %v1587
        %v1604 = vadd.f32 %v1445, %v1589
        %v1605 = vadd.f32 %v1446, %v1593
        %v1606 = vadd.f32 %v1447, %v1595
        %v1607 = vadd.f32 %v1448, %v1597
        %v1608 = vadd.f32 %v1449, %v1599
        %v1609 = vld [vmem:[%s3] sm:$0xff]
        %v1610 = vld [vmem:[%s3 + $0x8] sm:$0xff]
        %v1611 = vld [vmem:[%s3 + $0x10] sm:$0xff]
        %v1612 = vld [vmem:[%s3 + $0x18] sm:$0xff]
        %1614 = vset.pattern.permute.xlu0 0
        %1615 = vperm.xlu0 %1614, %v1609
        %v1616 = vpop.permute.xlu0 %1615
        %1619 = vset.pattern.permute.xlu0 0
        %1620 = vperm.xlu0 %1619, %v1610
        %v1621 = vpop.permute.xlu0 %1620
        %1624 = vset.pattern.permute.xlu0 0
        %1625 = vperm.xlu0 %1624, %v1611
        %v1626 = vpop.permute.xlu0 %1625
        %1629 = vset.pattern.permute.xlu0 0
        %1630 = vperm.xlu0 %1629, %v1612
        %v1631 = vpop.permute.xlu0 %1630
        %v1633 = vadd.f32 %v1601, %v1616
        %v1634 = vadd.f32 %v1602, %v1616
        %v1635 = vadd.f32 %v1603, %v1621
        %v1636 = vadd.f32 %v1604, %v1621
        %v1637 = vadd.f32 %v1605, %v1626
        %v1638 = vadd.f32 %v1606, %v1626
        %v1639 = vadd.f32 %v1607, %v1631
        %v1640 = vadd.f32 %v1608, %v1631
        %v1641 = vld [vmem:[%s4] sm:$0xff]
        %v1642 = vld [vmem:[%s4 + $0x8] sm:$0xff]
        %v1643 = vld [vmem:[%s4 + $0x10] sm:$0xff]
        %v1644 = vld [vmem:[%s4 + $0x18] sm:$0xff]
        %v1645 = vadd.f32 %v1633, %v1634
        %1646 = vadd.xlane.f32.xlu0 %v1645
        %v1647 = vpop.xlane.xlu0 %1646
        %v1648 = vadd.f32 %v1635, %v1636
        %1649 = vadd.xlane.f32.xlu0 %v1648
        %v1650 = vpop.xlane.xlu0 %1649
        %v1651 = vadd.f32 %v1637, %v1638
        %1652 = vadd.xlane.f32.xlu0 %v1651
        %v1653 = vpop.xlane.xlu0 %1652
        %v1654 = vadd.f32 %v1639, %v1640
        %1655 = vadd.xlane.f32.xlu0 %v1654
        %v1656 = vpop.xlane.xlu0 %1655
        %vm1657 = vcmask 261120
        %v1659 = vsel %vm1657, %v1641, 0
        %v1662 = vsel %vm1657, %v1642, 0
        %v1665 = vsel %vm1657, %v1643, 0
        %v1668 = vsel %vm1657, %v1644, 0
        %1670 = vmatprep.subr.mxu0 0.0
        %1671 = vmatpush1.msra.mxu0 0.0
        %1672 = vmatprep.subr.mxu0 0.0
        %1673 = vmatpush1.msra.mxu0 0.0
        %1674 = vmatprep.subr.mxu0 0.0
        %1675 = vmatpush1.msra.mxu0 0.0
        %1676 = vmatprep.subr.mxu0 0.0
        %1677 = vmatpush1.msra.mxu0 0.0
        %1678 = vmatprep.subr.mxu0 0.0
        %1679 = vmatpush1.msra.mxu0 0.0
        %1680 = vmatprep.subr.mxu0 0.0
        %1681 = vmatpush1.msra.mxu0 0.0
        %1682 = vmatprep.subr.mxu0 0.0
        %1683 = vmatpush1.msra.mxu0 0.0
        %1684 = vmatprep.subr.mxu0 0.0
        %1685 = vmatpush1.msra.mxu0 0.0
        %1686 = vmatprep.subr.mxu0 0.0
        %1687 = vmatpush1.msra.mxu0 0.0
        %1688 = vmatprep.subr.mxu0 0.0
        %1689 = vmatpush1.msra.mxu0 0.0
        %1690 = vmatprep.subr.mxu0 0.0
        %1691 = vmatpush1.msra.mxu0 0.0
        %1692 = vmatprep.subr.mxu0 0.0
        %1693 = vmatpush1.msra.mxu0 0.0
        %1694 = vmatprep.subr.mxu0 0.0
        %1695 = vmatpush1.msra.mxu0 %v1656
        %1696 = vmatprep.subr.mxu0 0.0
        %1697 = vmatpush1.msra.mxu0 %v1653
        %1698 = vmatprep.subr.mxu0 0.0
        %1699 = vmatpush1.msra.mxu0 %v1650
        %1700 = vmatprep.subr.mxu0 0.0
        %1701 = vmatpush1.msra.mxu0 %v1647
        %1702 = vmatprep.subr.mxu0 0.0
        %1703 = vmatpush2.msra.mxu0 0.0
        %1704 = vmatprep.subr.mxu0 0.0
        %1705 = vmatpush2.msra.mxu0 0.0
        %1706 = vmatprep.subr.mxu0 0.0
        %1707 = vmatpush2.msra.mxu0 0.0
        %1708 = vmatprep.subr.mxu0 0.0
        %1709 = vmatpush2.msra.mxu0 0.0
        %1710 = vmatprep.subr.mxu0 0.0
        %1711 = vmatpush2.msra.mxu0 0.0
        %1712 = vmatprep.subr.mxu0 0.0
        %1713 = vmatpush2.msra.mxu0 0.0
        %1714 = vmatprep.subr.mxu0 0.0
        %1715 = vmatpush2.msra.mxu0 0.0
        %1716 = vmatprep.subr.mxu0 0.0
        %1717 = vmatpush2.msra.mxu0 0.0
        %1718 = vmatprep.subr.mxu0 0.0
        %1719 = vmatpush2.msra.mxu0 0.0
        %1720 = vmatprep.subr.mxu0 0.0
        %1721 = vmatpush2.msra.mxu0 0.0
        %1722 = vmatprep.subr.mxu0 0.0
        %1723 = vmatpush2.msra.mxu0 0.0
        %1724 = vmatprep.subr.mxu0 0.0
        %1725 = vmatpush2.msra.mxu0 0.0
        %1726 = vmatprep.subr.mxu0 0.0
        %1727 = vmatpush2.msra.mxu0 0.0
        %1728 = vmatprep.subr.mxu0 0.0
        %1729 = vmatpush2.msra.mxu0 0.0
        %1730 = vmatprep.subr.mxu0 0.0
        %1731 = vmatpush2.msra.mxu0 0.0
        %1732 = vmatprep.subr.mxu0 0.0
        %1733 = vmatpush2.msra.mxu0 0.0
        %1734 = vmatprep.mubr.f32.mxu0 0.0
        %1735 = vmatmul.mubr.f32.gmra.mxu0 %v1659
        %v1736 = vpop.f32.mrf.mxu0
        %v1737 = vadd.f32 0.0, %v1736
        %v1738 = vpop.f32.mrf.mxu0
        %1739 = vmatprep.mubr.f32.mxu0 0.0
        %1740 = vmatmul.mubr.f32.gmra.mxu0 %v1662
        %v1741 = vpop.f32.mrf.mxu0
        %v1742 = vadd.f32 0.0, %v1741
        %v1743 = vpop.f32.mrf.mxu0
        %1744 = vmatprep.mubr.f32.mxu0 0.0
        %1745 = vmatmul.mubr.f32.gmra.mxu0 %v1665
        %v1746 = vpop.f32.mrf.mxu0
        %v1747 = vadd.f32 0.0, %v1746
        %v1748 = vpop.f32.mrf.mxu0
        %1749 = vmatprep.mubr.f32.mxu0 0.0
        %1750 = vmatmul.mubr.f32.gmra.mxu0 %v1668
        %v1751 = vpop.f32.mrf.mxu0
        %v1752 = vadd.f32 0.0, %v1751
        %v1753 = vpop.f32.mrf.mxu0
        %1754 = vdwg.mxu0
        %1756 = vset.pattern.permute.xlu0 0
        %1757 = vperm.xlu0 %1756, %v1737
        %v1758 = vpop.permute.xlu0 %1757
        %1761 = vset.pattern.permute.xlu0 0
        %1762 = vperm.xlu0 %1761, %v1742
        %v1763 = vpop.permute.xlu0 %1762
        %1766 = vset.pattern.permute.xlu0 0
        %1767 = vperm.xlu0 %1766, %v1747
        %v1768 = vpop.permute.xlu0 %1767
        %1771 = vset.pattern.permute.xlu0 0
        %1772 = vperm.xlu0 %1771, %v1752
        %v1773 = vpop.permute.xlu0 %1772
        %v1775 = vsub.f32 %v1633, %v1758
        %v1776 = vsub.f32 %v1634, %v1758
        %v1777 = vsub.f32 %v1635, %v1763
        %v1778 = vsub.f32 %v1636, %v1763
        %v1779 = vsub.f32 %v1637, %v1768
        %v1780 = vsub.f32 %v1638, %v1768
        %v1781 = vsub.f32 %v1639, %v1773
        %v1782 = vsub.f32 %v1640, %v1773
        %v1783 = vmul.f32 %v1775, %v1775
        %v1784 = vmul.f32 %v1776, %v1776
        %v1785 = vmul.f32 %v1777, %v1777
        %v1786 = vmul.f32 %v1778, %v1778
        %v1787 = vmul.f32 %v1779, %v1779
        %v1788 = vmul.f32 %v1780, %v1780
        %v1789 = vmul.f32 %v1781, %v1781
        %v1790 = vmul.f32 %v1782, %v1782
        %v1791 = vadd.f32 %v1783, %v1784
        %1792 = vadd.xlane.f32.xlu0 %v1791
        %v1793 = vpop.xlane.xlu0 %1792
        %v1794 = vadd.f32 %v1785, %v1786
        %1795 = vadd.xlane.f32.xlu0 %v1794
        %v1796 = vpop.xlane.xlu0 %1795
        %v1797 = vadd.f32 %v1787, %v1788
        %1798 = vadd.xlane.f32.xlu0 %v1797
        %v1799 = vpop.xlane.xlu0 %1798
        %v1800 = vadd.f32 %v1789, %v1790
        %1801 = vadd.xlane.f32.xlu0 %v1800
        %v1802 = vpop.xlane.xlu0 %1801
        %1803 = vmatprep.subr.mxu0 0.0
        %1804 = vmatpush1.msra.mxu0 0.0
        %1805 = vmatprep.subr.mxu0 0.0
        %1806 = vmatpush1.msra.mxu0 0.0
        %1807 = vmatprep.subr.mxu0 0.0
        %1808 = vmatpush1.msra.mxu0 0.0
        %1809 = vmatprep.subr.mxu0 0.0
        %1810 = vmatpush1.msra.mxu0 0.0
        %1811 = vmatprep.subr.mxu0 0.0
        %1812 = vmatpush1.msra.mxu0 0.0
        %1813 = vmatprep.subr.mxu0 0.0
        %1814 = vmatpush1.msra.mxu0 0.0
        %1815 = vmatprep.subr.mxu0 0.0
        %1816 = vmatpush1.msra.mxu0 0.0
        %1817 = vmatprep.subr.mxu0 0.0
        %1818 = vmatpush1.msra.mxu0 0.0
        %1819 = vmatprep.subr.mxu0 0.0
        %1820 = vmatpush1.msra.mxu0 0.0
        %1821 = vmatprep.subr.mxu0 0.0
        %1822 = vmatpush1.msra.mxu0 0.0
        %1823 = vmatprep.subr.mxu0 0.0
        %1824 = vmatpush1.msra.mxu0 0.0
        %1825 = vmatprep.subr.mxu0 0.0
        %1826 = vmatpush1.msra.mxu0 0.0
        %1827 = vmatprep.subr.mxu0 0.0
        %1828 = vmatpush1.msra.mxu0 %v1802
        %1829 = vmatprep.subr.mxu0 0.0
        %1830 = vmatpush1.msra.mxu0 %v1799
        %1831 = vmatprep.subr.mxu0 0.0
        %1832 = vmatpush1.msra.mxu0 %v1796
        %1833 = vmatprep.subr.mxu0 0.0
        %1834 = vmatpush1.msra.mxu0 %v1793
        %1835 = vmatprep.subr.mxu0 0.0
        %1836 = vmatpush2.msra.mxu0 0.0
        %1837 = vmatprep.subr.mxu0 0.0
        %1838 = vmatpush2.msra.mxu0 0.0
        %1839 = vmatprep.subr.mxu0 0.0
        %1840 = vmatpush2.msra.mxu0 0.0
        %1841 = vmatprep.subr.mxu0 0.0
        %1842 = vmatpush2.msra.mxu0 0.0
        %1843 = vmatprep.subr.mxu0 0.0
        %1844 = vmatpush2.msra.mxu0 0.0
        %1845 = vmatprep.subr.mxu0 0.0
        %1846 = vmatpush2.msra.mxu0 0.0
        %1847 = vmatprep.subr.mxu0 0.0
        %1848 = vmatpush2.msra.mxu0 0.0
        %1849 = vmatprep.subr.mxu0 0.0
        %1850 = vmatpush2.msra.mxu0 0.0
        %1851 = vmatprep.subr.mxu0 0.0
        %1852 = vmatpush2.msra.mxu0 0.0
        %1853 = vmatprep.subr.mxu0 0.0
        %1854 = vmatpush2.msra.mxu0 0.0
        %1855 = vmatprep.subr.mxu0 0.0
        %1856 = vmatpush2.msra.mxu0 0.0
        %1857 = vmatprep.subr.mxu0 0.0
        %1858 = vmatpush2.msra.mxu0 0.0
        %1859 = vmatprep.subr.mxu0 0.0
        %1860 = vmatpush2.msra.mxu0 0.0
        %1861 = vmatprep.subr.mxu0 0.0
        %1862 = vmatpush2.msra.mxu0 0.0
        %1863 = vmatprep.subr.mxu0 0.0
        %1864 = vmatpush2.msra.mxu0 0.0
        %1865 = vmatprep.subr.mxu0 0.0
        %1866 = vmatpush2.msra.mxu0 0.0
        %1867 = vmatprep.mubr.f32.mxu0 0.0
        %1868 = vmatmul.mubr.f32.gmra.mxu0 %v1659
        %v1869 = vpop.f32.mrf.mxu0
        %v1870 = vadd.f32 1e-05, %v1869
        %v1871 = vpop.f32.mrf.mxu0
        %1872 = vmatprep.mubr.f32.mxu0 0.0
        %1873 = vmatmul.mubr.f32.gmra.mxu0 %v1662
        %v1874 = vpop.f32.mrf.mxu0
        %v1875 = vadd.f32 1e-05, %v1874
        %v1876 = vpop.f32.mrf.mxu0
        %1877 = vmatprep.mubr.f32.mxu0 0.0
        %1878 = vmatmul.mubr.f32.gmra.mxu0 %v1665
        %v1879 = vpop.f32.mrf.mxu0
        %v1880 = vadd.f32 1e-05, %v1879
        %v1881 = vpop.f32.mrf.mxu0
        %1882 = vmatprep.mubr.f32.mxu0 0.0
        %1883 = vmatmul.mubr.f32.gmra.mxu0 %v1668
        %v1884 = vpop.f32.mrf.mxu0
        %v1885 = vadd.f32 1e-05, %v1884
        %v1886 = vpop.f32.mrf.mxu0
        %1887 = vdwg.mxu0
        %v1888 = vrsqrt.pop %v1870
        %v1889 = vrsqrt.pop %v1875
        %v1890 = vrsqrt.pop %v1880
        %v1891 = vrsqrt.pop %v1885
        %1892 = vrot.lane.b32.xlu0 %v1609, 127
        %v1893 = vpop.permute.xlu0 %1892
        %1894 = vrot.lane.b32.xlu0 %v1610, 127
        %v1895 = vpop.permute.xlu0 %1894
        %1896 = vrot.lane.b32.xlu0 %v1611, 127
        %v1897 = vpop.permute.xlu0 %1896
        %1898 = vrot.lane.b32.xlu0 %v1612, 127
        %v1899 = vpop.permute.xlu0 %1898
        %v1904 = vmul.f32 %v1888, %v1893
        %v1905 = vmul.f32 %v1889, %v1895
        %v1906 = vmul.f32 %v1890, %v1897
        %v1907 = vmul.f32 %v1891, %v1899
        %1909 = vset.pattern.permute.xlu0 0
        %1910 = vperm.xlu0 %1909, %v1904
        %v1911 = vpop.permute.xlu0 %1910
        %1914 = vset.pattern.permute.xlu0 0
        %1915 = vperm.xlu0 %1914, %v1905
        %v1916 = vpop.permute.xlu0 %1915
        %1919 = vset.pattern.permute.xlu0 0
        %1920 = vperm.xlu0 %1919, %v1906
        %v1921 = vpop.permute.xlu0 %1920
        %1924 = vset.pattern.permute.xlu0 0
        %1925 = vperm.xlu0 %1924, %v1907
        %v1926 = vpop.permute.xlu0 %1925
        %v1928 = vmul.f32 %v1775, %v1911
        %v1929 = vmul.f32 %v1776, %v1911
        %v1930 = vmul.f32 %v1777, %v1916
        %v1931 = vmul.f32 %v1778, %v1916
        %v1932 = vmul.f32 %v1779, %v1921
        %v1933 = vmul.f32 %v1780, %v1921
        %v1934 = vmul.f32 %v1781, %v1926
        %v1935 = vmul.f32 %v1782, %v1926
        %1936 = vset.pattern.permute.xlu0 2
        %1937 = vperm.xlu0 %1936, %v1609
        %v1938 = vpop.permute.xlu0 %1937
        %1940 = vset.pattern.permute.xlu0 2
        %1941 = vperm.xlu0 %1940, %v1610
        %v1942 = vpop.permute.xlu0 %1941
        %1944 = vset.pattern.permute.xlu0 2
        %1945 = vperm.xlu0 %1944, %v1611
        %v1946 = vpop.permute.xlu0 %1945
        %1948 = vset.pattern.permute.xlu0 2
        %1949 = vperm.xlu0 %1948, %v1612
        %v1950 = vpop.permute.xlu0 %1949
        %v1952 = vadd.f32 %v1928, %v1938
        %v1953 = vadd.f32 %v1929, %v1938
        %v1954 = vadd.f32 %v1930, %v1942
        %v1955 = vadd.f32 %v1931, %v1942
        %v1956 = vadd.f32 %v1932, %v1946
        %v1957 = vadd.f32 %v1933, %v1946
        %v1958 = vadd.f32 %v1934, %v1950
        %v1959 = vadd.f32 %v1935, %v1950
        %v1960 = vmax.f32 %v1952, 0.0
        %v1961 = vmax.f32 %v1953, 0.0
        %v1962 = vmax.f32 %v1954, 0.0
        %v1963 = vmax.f32 %v1955, 0.0
        %v1964 = vmax.f32 %v1956, 0.0
        %v1965 = vmax.f32 %v1957, 0.0
        %v1966 = vmax.f32 %v1958, 0.0
        %v1967 = vmax.f32 %v1959, 0.0
        %1968 = vst [vmem:[%s217] sm:$0xff] %v1960
        %1969 = vst [vmem:[%s217 + $0x8] sm:$0xff] %v1961
        %1970 = vst [vmem:[%s217 + $0x10] sm:$0xff] %v1962
        %1971 = vst [vmem:[%s217 + $0x18] sm:$0xff] %v1963
        %1972 = vst [vmem:[%s217 + $0x20] sm:$0xff] %v1964
        %1973 = vst [vmem:[%s217 + $0x28] sm:$0xff] %v1965
        %1974 = vst [vmem:[%s217 + $0x30] sm:$0xff] %v1966
        %1975 = vst [vmem:[%s217 + $0x38] sm:$0xff] %v1967
        %s1976 = sand.u32 %s137, 1
        %s1977 = scalar_lea.sflag [#allocation3], %s1976
        %s1978 = sand.u32 %s137, 1
        %s1979 = smul.addr %s1978, 64
        %s1980 = scalar_lea.vmem [#allocation2], %s1979
        // Predicated region
        $region41: #{tpu_custom_call.1} parent=39 // pred_check
          %p1981 = pneg %p147
        $region42: #{tpu_custom_call.1} parent=39 // pred_check_branch
          %1983 = sbr.rel (%p1981) target = $region44
        $region43: #{tpu_custom_call.1} parent=39 // pred_region
          %s1985 = ssub.s32 1024, 1024
          %1986 = vsyncadd %s1977, %s1985
          %s1987 = smul.addr %s19, 8
          %s1988 = smul.addr %s1987, 128
          %s1989 = scalar_lea.hbm %s5, %s1988
          %s1990 = sshll.u32 %s1980, 4
          %s1991 = int_to_ptr.vmem [resolvable:$true] %s1990
          %1996 = dma.vmem_to_hbm [thread:$0]  %s1991, 1024, %s1989, %s1977, 256, 256, 16
        $region44: #{tpu_custom_call.1} parent=39 // pred_fallthru
          _
      $region40: #{tpu_custom_call.1} parent=5 // pred_fallthru
        _
      %p1997 = scmp.le.s32.totalorder 2, %s14
      // Predicated region
      $region45: #{tpu_custom_call.1} parent=5 // pred_check
        %p1998 = pneg %p1997
      $region46: #{tpu_custom_call.1} parent=5 // pred_check_branch
        %2000 = sbr.rel (%p1998) target = $region48
      $region47: #{tpu_custom_call.1} parent=5 // pred_region
        %s2001 = ssub.s32 %s14, 2
        // Predicated region
        $region49: #{tpu_custom_call.1} parent=47 // pred_check
          %p2002 = pneg %p153
        $region50: #{tpu_custom_call.1} parent=47 // pred_check_branch
          %2004 = sbr.rel (%p2002) target = $region52
        $region51: #{tpu_custom_call.1} parent=47 // pred_region
          %s2005 = sand.u32 %s138, 1
          %s2006 = scalar_lea.sflag [#allocation3], %s2005
          %s2007 = sand.u32 %s138, 1
          %s2008 = smul.addr %s2007, 64
          %s2009 = scalar_lea.vmem [#allocation2], %s2008
          %2010 = dma.done %s2006, 1024
        $region52: #{tpu_custom_call.1} parent=47 // pred_fallthru
          _
      $region48: #{tpu_custom_call.1} parent=5 // pred_fallthru
        _
    $region6: #{tpu_custom_call.1} parent=1 // loop_footer
      %s18 = sadd.s32 1, %s14
    $region7: #{tpu_custom_call.1} parent=1 // loop_footer_branch
      %13 = sbr.rel target = $region3
    $region8: #{tpu_custom_call.1} parent=1 // loop_exit
      _
    %2011 = vsyncpa [#allocation3], 1
    %s2012 = scalar_lea.sflag [#allocation3], 1
    %2013 = vsyncpa %s2012, 1

</llo_original>
